<compile_context>
chip_gen: v7x
topology: tpu7x:2x2x1
jax: 0.10.0
libtpu: 0.0.40
codegen_flags: <defaults>
</compile_context>

<pallas_src>
import jax
import jax.numpy as jnp
from jax import lax
from jax.experimental import pallas as pl
from jax.experimental.pallas import tpu as pltpu

LANE = 128   # f32 lane width


def _round_up(x, m):
    return (x + m - 1) // m * m


def _pick_t_chunk(T, cap):
    """Largest chunk size <= cap that divides T (recurrence cannot pad T)."""
    tc = max(1, min(T, int(cap)))
    while T % tc:
        tc -= 1
    return tc


def _vmem_limit_bytes(*, t_chunk, bslab, hidden_pad, matmul_dtype, out_pad=None):
    """Explicit scoped-VMEM limit from the actual working set (review item 3)."""
    isz = jnp.dtype(matmul_dtype).itemsize
    Hp = hidden_pad
    est = 2 * t_chunk * bslab * 4 * Hp * isz          # gx input chunks (double-buffered)
    est += 2 * Hp * 4 * Hp * isz                      # resident W_hh (2 pipeline bufs)
    est += 2 * bslab * Hp * 4                         # h, c scratch (f32)
    if out_pad is None:
        est += 2 * t_chunk * bslab * Hp * isz         # h-sequence output chunks
    else:
        est += 2 * (Hp * out_pad * isz + out_pad * 4) # resident fc_w, fc_b
        est += 2 * bslab * out_pad * 4                # resident output block
    est = int(est * 1.25) + (2 << 20)                 # 25% + 2 MiB headroom
    return int(min(max(est, 32 << 20), 64 << 20))     # stay within v7x physical VMEM


# ----------------------------- recurrence kernel -----------------------------

def _make_recurrence_kernel(*, hidden_pad, t_chunk, matmul_dtype, unroll,
                            emit_sequence):
    """Pure recurrence kernel (input projection precomputed outside).

    Refs (emit_sequence=True):
      gx_ref:  (t_chunk, Bslab, 4*Hp)   precomputed x@W_ih^T + b, gate order [i,f,g,o]
      whh_ref: (Hp, 4*Hp)               transposed, gate-padded W_hh (resident)
      out_ref: (t_chunk, Bslab, Hp)     hidden-state sequence chunk
      h_ref, c_ref: (Bslab, Hp) f32     recurrent state, persists across T-chunks
    Refs (emit_sequence=False, last layer, fused fc):
      gx_ref, whh_ref, fcw_ref (Hp, Op), fcb_ref (1, Op), out_ref (Bslab, Op) f32,
      h_ref, c_ref
    """
    H = hidden_pad

    def kernel(*refs):
        if emit_sequence:
            gx_ref, whh_ref, out_ref, h_ref, c_ref = refs
        else:
            gx_ref, whh_ref, fcw_ref, fcb_ref, out_ref, h_ref, c_ref = refs

        # Zero the recurrent state at the first T-chunk of every batch slab.
        @pl.when(pl.program_id(1) == 0)
        def _init():
            h_ref[...] = jnp.zeros_like(h_ref)
            c_ref[...] = jnp.zeros_like(c_ref)
            if not emit_sequence:
                # Insurance: the resident output block is never left uninitialized.
                out_ref[...] = jnp.zeros_like(out_ref)

        # Serial recurrence: h/c live in registers, one MXU matmul per step.
        def step(s, carry):
            h, c = carry
            gates = gx_ref[s].astype(jnp.float32) + jnp.dot(
                h.astype(matmul_dtype), whh_ref[...],
                preferred_element_type=jnp.float32)
            i_g = jax.nn.sigmoid(gates[:, 0 * H:1 * H])
            f_g = jax.nn.sigmoid(gates[:, 1 * H:2 * H])
            g_g = jnp.tanh(gates[:, 2 * H:3 * H])
            o_g = jax.nn.sigmoid(gates[:, 3 * H:4 * H])
            c_new = f_g * c + i_g * g_g
            h_new = o_g * jnp.tanh(c_new)
            if emit_sequence:
                out_ref[s] = h_new.astype(out_ref.dtype)
            return h_new, c_new

        h_fin, c_fin = lax.fori_loop(0, t_chunk, step,
                                     (h_ref[...], c_ref[...]), unroll=unroll)
        h_ref[...] = h_fin
        c_ref[...] = c_fin

        if not emit_sequence:
            # Fused final Linear on the last hidden state (last T-chunk only).
            @pl.when(pl.program_id(1) == pl.num_programs(1) - 1)
            def _fc():
                out_ref[...] = (
                    jnp.dot(h_fin.astype(matmul_dtype), fcw_ref[...],
                            preferred_element_type=jnp.float32)
                    + fcb_ref[...])

    return kernel


def _lstm_recurrence_seq(gx, whh, *, t_chunk, bslab, hidden_pad, matmul_dtype,
                         unroll):
    """gx: (T, Bp, 4Hp) -> hidden-state sequence (T, Bp, Hp)."""
    T, Bp, _ = gx.shape
    Hp = hidden_pad
    kernel = _make_recurrence_kernel(hidden_pad=Hp, t_chunk=t_chunk,
                                     matmul_dtype=matmul_dtype, unroll=unroll,
                                     emit_sequence=True)
    vmem_limit = _vmem_limit_bytes(t_chunk=t_chunk, bslab=bslab, hidden_pad=Hp,
                                   matmul_dtype=matmul_dtype)
    return pl.pallas_call(
        kernel,
        out_shape=jax.ShapeDtypeStruct((T, Bp, Hp), matmul_dtype),
        grid_spec=pltpu.PrefetchScalarGridSpec(
            num_scalar_prefetch=0,
            grid=(Bp // bslab, T // t_chunk),
            in_specs=[
                pl.BlockSpec((t_chunk, bslab, 4 * Hp), lambda b, t: (t, b, 0)),
                pl.BlockSpec((Hp, 4 * Hp), lambda b, t: (0, 0)),   # resident W_hh
            ],
            out_specs=pl.BlockSpec((t_chunk, bslab, Hp), lambda b, t: (t, b, 0)),
            scratch_shapes=[pltpu.VMEM((bslab, Hp), jnp.float32),   # h
                            pltpu.VMEM((bslab, Hp), jnp.float32)],  # c
        ),
        compiler_params=pltpu.CompilerParams(
            dimension_semantics=("parallel", "arbitrary"),  # batch slabs || T serial
            vmem_limit_bytes=vmem_limit),
    )(gx, whh)


def _lstm_recurrence_final(gx, whh, fc_w, fc_b, *, t_chunk, bslab, hidden_pad,
                           out_pad, matmul_dtype, unroll):
    """Last LSTM layer with fused Linear epilogue: gx (T, Bp, 4Hp) -> (Bp, Op)."""
    T, Bp, _ = gx.shape
    Hp = hidden_pad
    kernel = _make_recurrence_kernel(hidden_pad=Hp, t_chunk=t_chunk,
                                     matmul_dtype=matmul_dtype, unroll=unroll,
                                     emit_sequence=False)
    vmem_limit = _vmem_limit_bytes(t_chunk=t_chunk, bslab=bslab, hidden_pad=Hp,
                                   matmul_dtype=matmul_dtype, out_pad=out_pad)
    return pl.pallas_call(
        kernel,
        out_shape=jax.ShapeDtypeStruct((Bp, out_pad), jnp.float32),
        grid_spec=pltpu.PrefetchScalarGridSpec(
            num_scalar_prefetch=0,
            grid=(Bp // bslab, T // t_chunk),
            in_specs=[
                pl.BlockSpec((t_chunk, bslab, 4 * Hp), lambda b, t: (t, b, 0)),
                pl.BlockSpec((Hp, 4 * Hp), lambda b, t: (0, 0)),    # resident W_hh
                pl.BlockSpec((Hp, out_pad), lambda b, t: (0, 0)),   # resident fc_w
                pl.BlockSpec((1, out_pad), lambda b, t: (0, 0)),    # resident fc_b
            ],
            out_specs=pl.BlockSpec((bslab, out_pad), lambda b, t: (b, 0)),
            scratch_shapes=[pltpu.VMEM((bslab, Hp), jnp.float32),   # h
                            pltpu.VMEM((bslab, Hp), jnp.float32)],  # c
        ),
        compiler_params=pltpu.CompilerParams(
            dimension_semantics=("parallel", "arbitrary"),
            vmem_limit_bytes=vmem_limit),
    )(gx, whh, fc_w, fc_b)


# ------------------------- parameter init / preparation ------------------------

def init_vlstm_params(key, input_dim, output_dim, hidden_dim, num_layers):
    """PyTorch-layout parameters (uniform +/- 1/sqrt(H)), gate order [i, f, g, o]."""
    params = {"layers": []}
    bound = 1.0 / jnp.sqrt(jnp.asarray(hidden_dim, jnp.float32))
    for l in range(num_layers):
        d_in = input_dim if l == 0 else hidden_dim
        key, k1, k2, k3, k4 = jax.random.split(key, 5)
        params["layers"].append({
            "w_ih": jax.random.uniform(k1, (4 * hidden_dim, d_in), jnp.float32, -bound, bound),
            "w_hh": jax.random.uniform(k2, (4 * hidden_dim, hidden_dim), jnp.float32, -bound, bound),
            "b_ih": jax.random.uniform(k3, (4 * hidden_dim,), jnp.float32, -bound, bound),
            "b_hh": jax.random.uniform(k4, (4 * hidden_dim,), jnp.float32, -bound, bound),
        })
    key, k1, k2 = jax.random.split(key, 3)
    params["fc_w"] = jax.random.uniform(k1, (output_dim, hidden_dim), jnp.float32, -bound, bound)
    params["fc_b"] = jax.random.uniform(k2, (output_dim,), jnp.float32, -bound, bound)
    return params


def prepare_params(params, *, matmul_dtype=jnp.bfloat16):
    """One-time transpose / per-gate lane-pad / cast of all weights.

    Zero padding is inert: padded gate columns have zero weights and zero bias, so
    padded c,h columns stay exactly 0 (valid as long as initial states are zero).
    bf16 matmul operands are used on all generations (v5e MXU runs bf16 at full
    rate; gate math stays f32 so the missing bf16 VPU/EUP on v5e is irrelevant).
    """
    layers = params["layers"]
    H = layers[0]["w_hh"].shape[1]
    Hp = _round_up(H, LANE)
    prepped = {"layers": [], "hidden_dim": H, "hidden_pad": Hp,
               "matmul_dtype": matmul_dtype}
    for l, layer in enumerate(layers):
        d_in = layer["w_ih"].shape[1]
        d_in_pad = d_in if l == 0 else Hp        # layer>=1 consumes the padded hidden
        wih = jnp.transpose(layer["w_ih"]).reshape(d_in, 4, H)           # (Din,4,H)
        wih = jnp.pad(wih, ((0, d_in_pad - d_in), (0, 0), (0, Hp - H)))
        wih = wih.reshape(d_in_pad, 4 * Hp).astype(matmul_dtype)
        whh = jnp.transpose(layer["w_hh"]).reshape(H, 4, H)              # (H,4,H)
        whh = jnp.pad(whh, ((0, Hp - H), (0, 0), (0, Hp - H)))
        whh = whh.reshape(Hp, 4 * Hp).astype(matmul_dtype)
        bias = (layer["b_ih"] + layer["b_hh"]).reshape(4, H)
        bias = jnp.pad(bias, ((0, 0), (0, Hp - H))).reshape(1, 4 * Hp)
        prepped["layers"].append({"w_ih": wih, "w_hh": whh,
                                  "bias": bias.astype(jnp.float32)})
    O = params["fc_w"].shape[0]
    Op = _round_up(O, LANE)
    fcw = jnp.transpose(params["fc_w"])                                   # (H, O)
    fcw = jnp.pad(fcw, ((0, Hp - H), (0, Op - O))).astype(matmul_dtype)
    fcb = jnp.pad(params["fc_b"], (0, Op - O)).reshape(1, Op).astype(jnp.float32)
    prepped["fc_w"] = fcw
    prepped["fc_b"] = fcb
    prepped["output_dim"] = O
    prepped["output_pad"] = Op
    return prepped


# ------------------------------- model forward ---------------------------------

def vlstm_forward(prepped, x_bct, *, t_chunk_target=32, unroll=4):
    """x_bct: (B, input_dim, T) -> (B, output_dim).  Matches vLSTM.forward."""
    B, _, T = x_bct.shape
    mdt = prepped["matmul_dtype"]
    Hp = prepped["hidden_pad"]
    Op = prepped["output_pad"]
    isz = jnp.dtype(mdt).itemsize

    # Sublane unit: 16 rows for 16-bit storage (native bf16 (16,128) tiles), 8 for f32.
    bp_unit = 32 // isz
    # v7x: split the padded batch into 2 slabs so both TensorCores get work.
    n_bslabs = 2 if B >= 2 * bp_unit else 1
    Bp = _round_up(B, n_bslabs * bp_unit)
    bslab = Bp // n_bslabs

    # T-chunk: largest divisor of T under both the target and a VMEM chunk budget
    # (gx + h-seq chunks, double-buffered).  Re-derives per dtype/batch (item 4).
    chunk_budget = 24 << 20
    row_bytes = 2 * bslab * (4 * Hp + Hp) * isz
    t_chunk = _pick_t_chunk(T, min(t_chunk_target, max(1, chunk_budget // row_bytes)))

    # permute(0,2,1) -> (B,T,C); go time-major and pad batch: (T, Bp, C).
    x = jnp.transpose(x_bct, (2, 0, 1)).astype(jnp.float32)
    x = jnp.pad(x, ((0, 0), (0, Bp - B), (0, 0)))
    seq = x

    n_layers = len(prepped["layers"])
    y = None
    for l, layer in enumerate(prepped["layers"]):
        d_in = seq.shape[-1]
        # Hoisted input projection: one XLA matmul over the whole sequence (fully
        # parallel over T*Bp, never serializes with the recurrence kernel).
        gx = (jnp.dot(seq.reshape(T * Bp, d_in).astype(mdt), layer["w_ih"],
                      preferred_element_type=jnp.float32)
              + layer["bias"])
        gx = gx.astype(mdt).reshape(T, Bp, 4 * Hp)

        if l < n_layers - 1:
            seq = _lstm_recurrence_seq(
                gx, layer["w_hh"], t_chunk=t_chunk, bslab=bslab, hidden_pad=Hp,
                matmul_dtype=mdt, unroll=unroll)
        else:
            y = _lstm_recurrence_final(
                gx, layer["w_hh"], prepped["fc_w"], prepped["fc_b"],
                t_chunk=t_chunk, bslab=bslab, hidden_pad=Hp, out_pad=Op,
                matmul_dtype=mdt, unroll=unroll)
    return y[:B, :prepped["output_dim"]]


# ------------------------------ pure-JAX reference -----------------------------

def _vlstm_reference(params, x_bct):
    x = jnp.transpose(x_bct, (0, 2, 1)).astype(jnp.float32)   # (B, T, C)
    B, T, _ = x.shape
    H = params["layers"][0]["w_hh"].shape[1]
    seq = x
    for layer in params["layers"]:
        w_ih, w_hh = layer["w_ih"], layer["w_hh"]
        b = layer["b_ih"] + layer["b_hh"]

        def step(carry, x_t):
            h, c = carry
            gates = x_t @ w_ih.T + h @ w_hh.T + b
            i, f, g, o = jnp.split(gates, 4, axis=-1)
            c = jax.nn.sigmoid(f) * c + jax.nn.sigmoid(i) * jnp.tanh(g)
            h = jax.nn.sigmoid(o) * jnp.tanh(c)
            return (h, c), h

        h0 = jnp.zeros((B, H), jnp.float32)
        c0 = jnp.zeros((B, H), jnp.float32)
        _, outs = lax.scan(step, (h0, c0), jnp.transpose(seq, (1, 0, 2)))
        seq = jnp.transpose(outs, (1, 0, 2))
    return seq[:, -1, :] @ params["fc_w"].T + params["fc_b"]


# ----------------------------------- main --------------------------------------

if __name__ == "__main__":
    INPUT_DIM, SEQ_LEN = 4, 8
    HIDDEN_DIM, OUTPUT_DIM, NUM_LAYERS = 32, 4, 2

    key = jax.random.PRNGKey(0)
    key, pkey, xkey, xkey2 = jax.random.split(key, 4)
    params = init_vlstm_params(pkey, INPUT_DIM, OUTPUT_DIM, HIDDEN_DIM, NUM_LAYERS)

    # --- f32 matmul path, multi T-chunk grid: exact check against the reference.
    x_small = jax.random.normal(xkey, (2, INPUT_DIM, SEQ_LEN), jnp.float32)
    ref_small = jax.block_until_ready(_vlstm_reference(params, x_small))
    prepped_f32 = prepare_params(params, matmul_dtype=jnp.float32)
    out_f32 = jax.block_until_ready(
        vlstm_forward(prepped_f32, x_small, t_chunk_target=4))
    assert out_f32.shape == (2, OUTPUT_DIM), out_f32.shape
    assert jnp.allclose(out_f32, ref_small, atol=1e-5, rtol=1e-5), (out_f32, ref_small)

    # --- bf16 matmul-operand path (default on all generations): loose tolerance.
    prepped_bf16 = prepare_params(params)   # bfloat16 default
    out_bf16 = jax.block_until_ready(vlstm_forward(prepped_bf16, x_small))
    assert out_bf16.shape == (2, OUTPUT_DIM), out_bf16.shape
    assert jnp.allclose(out_bf16, ref_small, atol=5e-2, rtol=5e-2), (out_bf16, ref_small)

    # --- bf16 path with the batch split into 2 parallel slabs (v7x dual-TC path).
    x_big = jax.random.normal(xkey2, (32, INPUT_DIM, SEQ_LEN), jnp.float32)
    ref_big = jax.block_until_ready(_vlstm_reference(params, x_big))
    out_big = jax.block_until_ready(
        vlstm_forward(prepped_bf16, x_big, t_chunk_target=4))
    assert out_big.shape == (32, OUTPUT_DIM), out_big.shape
    assert jnp.allclose(out_big, ref_big, atol=5e-2, rtol=5e-2), (out_big, ref_big)

    print("KERNEL_OK")
</pallas_src>

<mosaic_0001>
module attributes {stable_mosaic.version = 11 : i64} {
  func.func @kernel(%arg0: i32, %arg1: i32, %arg2: memref<4x8x512xf32, #tpu.memory_space<vmem>>, %arg3: memref<128x512xf32, #tpu.memory_space<vmem>>, %arg4: memref<4x8x128xf32, #tpu.memory_space<vmem>>, %arg5: memref<8x128xf32, #tpu.memory_space<vmem>>, %arg6: memref<8x128xf32, #tpu.memory_space<vmem>>) attributes {dimension_semantics = [#tpu.dimension_semantics<parallel>, #tpu.dimension_semantics<arbitrary>], iteration_bounds = array<i64: 1, 2>, scalar_prefetch = 0 : i64, scratch_operands = 2 : i64, tpu.core_type = #tpu.core_type<tc>, window_params = [{transform_indices = @transform_0, window_bounds = array<i64: 4, 8, 512>}, {pipeline_mode = #tpu.pipeline_mode<synchronous>, transform_indices = @transform_1, window_bounds = array<i64: 128, 512>}, {transform_indices = @transform_2, window_bounds = array<i64: 4, 8, 128>}]} {
    %c0_i32 = arith.constant 0 : i32
    %0 = arith.cmpi eq, %arg1, %c0_i32 : i32
    %1 = arith.extui %0 : i1 to i32
    %c0_i32_0 = arith.constant 0 : i32
    %2 = arith.cmpi ne, %1, %c0_i32_0 : i32
    scf.if %2 {
      %cst_48 = arith.constant 0.000000e+00 : f32
      %147 = vector.broadcast %cst_48 : f32 to vector<8x128xf32>
      %c0_49 = arith.constant 0 : index
      %c0_50 = arith.constant 0 : index
      %148 = vector.load %arg5[%c0_49, %c0_50] : memref<8x128xf32, #tpu.memory_space<vmem>>, vector<8x128xf32>
      tpu.vector_store %arg5[%c0_49, %c0_50], %147 {strides = array<i32>} : memref<8x128xf32, #tpu.memory_space<vmem>>, vector<8x128xf32>,
      %cst_51 = arith.constant 0.000000e+00 : f32
      %149 = vector.broadcast %cst_51 : f32 to vector<8x128xf32>
      %c0_52 = arith.constant 0 : index
      %c0_53 = arith.constant 0 : index
      %150 = vector.load %arg6[%c0_52, %c0_53] : memref<8x128xf32, #tpu.memory_space<vmem>>, vector<8x128xf32>
      tpu.vector_store %arg6[%c0_52, %c0_53], %149 {strides = array<i32>} : memref<8x128xf32, #tpu.memory_space<vmem>>, vector<8x128xf32>,
    } else {
    }
    %c0 = arith.constant 0 : index
    %c0_1 = arith.constant 0 : index
    %3 = vector.load %arg5[%c0, %c0_1] : memref<8x128xf32, #tpu.memory_space<vmem>>, vector<8x128xf32>
    %c0_2 = arith.constant 0 : index
    %c0_3 = arith.constant 0 : index
    %4 = vector.load %arg6[%c0_2, %c0_3] : memref<8x128xf32, #tpu.memory_space<vmem>>, vector<8x128xf32>
    %c0_i32_4 = arith.constant 0 : i32
    %5 = arith.index_cast %c0_i32_4 : i32 to index
    %c0_5 = arith.constant 0 : index
    %c0_6 = arith.constant 0 : index
    %6 = vector.load %arg2[%5, %c0_5, %c0_6] : memref<4x8x512xf32, #tpu.memory_space<vmem>>, vector<1x8x512xf32>
    %7 = vector.shape_cast %6 : vector<1x8x512xf32> to vector<8x512xf32>
    %c0_7 = arith.constant 0 : index
    %c0_8 = arith.constant 0 : index
    %8 = vector.load %arg3[%c0_7, %c0_8] : memref<128x512xf32, #tpu.memory_space<vmem>>, vector<128x512xf32>
    %cst = arith.constant dense<0.000000e+00> : vector<8x512xf32>
    %9 = tpu.matmul %3, %8, %cst {dimension_numbers = #tpu.dot_dimension_numbers<[1], [0], [0], [1], [0, 0, 1, 1], [], []>} : vector<8x128xf32>, vector<128x512xf32>, vector<8x512xf32> -> vector<8x512xf32>
    %10 = arith.addf %7, %9 : vector<8x512xf32>
    %11 = vector.extract_strided_slice %10 {offsets = [0, 0], sizes = [8, 128], strides = [1, 1]} : vector<8x512xf32> to vector<8x128xf32>
    %12 = arith.negf %11 : vector<8x128xf32>
    %13 = math.exp %12 : vector<8x128xf32>
    %cst_9 = arith.constant 1.000000e+00 : f32
    %14 = vector.broadcast %cst_9 : f32 to vector<8x128xf32>
    %15 = arith.addf %14, %13 : vector<8x128xf32>
    %16 = arith.divf %14, %15 : vector<8x128xf32>
    %17 = vector.extract_strided_slice %10 {offsets = [0, 128], sizes = [8, 128], strides = [1, 1]} : vector<8x512xf32> to vector<8x128xf32>
    %18 = arith.negf %17 : vector<8x128xf32>
    %19 = math.exp %18 : vector<8x128xf32>
    %cst_10 = arith.constant 1.000000e+00 : f32
    %20 = vector.broadcast %cst_10 : f32 to vector<8x128xf32>
    %21 = arith.addf %20, %19 : vector<8x128xf32>
    %22 = arith.divf %20, %21 : vector<8x128xf32>
    %23 = vector.extract_strided_slice %10 {offsets = [0, 256], sizes = [8, 128], strides = [1, 1]} : vector<8x512xf32> to vector<8x128xf32>
    %24 = math.tanh %23 : vector<8x128xf32>
    %25 = vector.extract_strided_slice %10 {offsets = [0, 384], sizes = [8, 128], strides = [1, 1]} : vector<8x512xf32> to vector<8x128xf32>
    %26 = arith.negf %25 : vector<8x128xf32>
    %27 = math.exp %26 : vector<8x128xf32>
    %cst_11 = arith.constant 1.000000e+00 : f32
    %28 = vector.broadcast %cst_11 : f32 to vector<8x128xf32>
    %29 = arith.addf %28, %27 : vector<8x128xf32>
    %30 = arith.divf %28, %29 : vector<8x128xf32>
    %31 = arith.mulf %22, %4 : vector<8x128xf32>
    %32 = arith.mulf %16, %24 : vector<8x128xf32>
    %33 = arith.addf %31, %32 : vector<8x128xf32>
    %34 = math.tanh %33 : vector<8x128xf32>
    %35 = arith.mulf %30, %34 : vector<8x128xf32>
    %36 = arith.index_cast %c0_i32_4 : i32 to index
    %c0_12 = arith.constant 0 : index
    %c0_13 = arith.constant 0 : index
    %37 = vector.load %arg4[%36, %c0_12, %c0_13] : memref<4x8x128xf32, #tpu.memory_space<vmem>>, vector<1x8x128xf32>
    %38 = vector.shape_cast %37 : vector<1x8x128xf32> to vector<8x128xf32>
    %39 = vector.shape_cast %35 : vector<8x128xf32> to vector<1x8x128xf32>
    tpu.vector_store %arg4[%36, %c0_12, %c0_13], %39 {strides = array<i32>} : memref<4x8x128xf32, #tpu.memory_space<vmem>>, vector<1x8x128xf32>,
    %c1_i32 = arith.constant 1 : i32
    %40 = arith.index_cast %c1_i32 : i32 to index
    %c0_14 = arith.constant 0 : index
    %c0_15 = arith.constant 0 : index
    %41 = vector.load %arg2[%40, %c0_14, %c0_15] : memref<4x8x512xf32, #tpu.memory_space<vmem>>, vector<1x8x512xf32>
    %42 = vector.shape_cast %41 : vector<1x8x512xf32> to vector<8x512xf32>
    %c0_16 = arith.constant 0 : index
    %c0_17 = arith.constant 0 : index
    %43 = vector.load %arg3[%c0_16, %c0_17] : memref<128x512xf32, #tpu.memory_space<vmem>>, vector<128x512xf32>
    %cst_18 = arith.constant dense<0.000000e+00> : vector<8x512xf32>
    %44 = tpu.matmul %35, %43, %cst_18 {dimension_numbers = #tpu.dot_dimension_numbers<[1], [0], [0], [1], [0, 0, 1, 1], [], []>} : vector<8x128xf32>, vector<128x512xf32>, vector<8x512xf32> -> vector<8x512xf32>
    %45 = arith.addf %42, %44 : vector<8x512xf32>
    %46 = vector.extract_strided_slice %45 {offsets = [0, 0], sizes = [8, 128], strides = [1, 1]} : vector<8x512xf32> to vector<8x128xf32>
    %47 = arith.negf %46 : vector<8x128xf32>
    %48 = math.exp %47 : vector<8x128xf32>
    %cst_19 = arith.constant 1.000000e+00 : f32
    %49 = vector.broadcast %cst_19 : f32 to vector<8x128xf32>
    %50 = arith.addf %49, %48 : vector<8x128xf32>
    %51 = arith.divf %49, %50 : vector<8x128xf32>
    %52 = vector.extract_strided_slice %45 {offsets = [0, 128], sizes = [8, 128], strides = [1, 1]} : vector<8x512xf32> to vector<8x128xf32>
    %53 = arith.negf %52 : vector<8x128xf32>
    %54 = math.exp %53 : vector<8x128xf32>
    %cst_20 = arith.constant 1.000000e+00 : f32
    %55 = vector.broadcast %cst_20 : f32 to vector<8x128xf32>
    %56 = arith.addf %55, %54 : vector<8x128xf32>
    %57 = arith.divf %55, %56 : vector<8x128xf32>
    %58 = vector.extract_strided_slice %45 {offsets = [0, 256], sizes = [8, 128], strides = [1, 1]} : vector<8x512xf32> to vector<8x128xf32>
    %59 = math.tanh %58 : vector<8x128xf32>
    %60 = vector.extract_strided_slice %45 {offsets = [0, 384], sizes = [8, 128], strides = [1, 1]} : vector<8x512xf32> to vector<8x128xf32>
    %61 = arith.negf %60 : vector<8x128xf32>
    %62 = math.exp %61 : vector<8x128xf32>
    %cst_21 = arith.constant 1.000000e+00 : f32
    %63 = vector.broadcast %cst_21 : f32 to vector<8x128xf32>
    %64 = arith.addf %63, %62 : vector<8x128xf32>
    %65 = arith.divf %63, %64 : vector<8x128xf32>
    %66 = arith.mulf %57, %33 : vector<8x128xf32>
    %67 = arith.mulf %51, %59 : vector<8x128xf32>
    %68 = arith.addf %66, %67 : vector<8x128xf32>
    %69 = math.tanh %68 : vector<8x128xf32>
    %70 = arith.mulf %65, %69 : vector<8x128xf32>
    %71 = arith.index_cast %c1_i32 : i32 to index
    %c0_22 = arith.constant 0 : index
    %c0_23 = arith.constant 0 : index
    %72 = vector.load %arg4[%71, %c0_22, %c0_23] : memref<4x8x128xf32, #tpu.memory_space<vmem>>, vector<1x8x128xf32>
    %73 = vector.shape_cast %72 : vector<1x8x128xf32> to vector<8x128xf32>
    %74 = vector.shape_cast %70 : vector<8x128xf32> to vector<1x8x128xf32>
    tpu.vector_store %arg4[%71, %c0_22, %c0_23], %74 {strides = array<i32>} : memref<4x8x128xf32, #tpu.memory_space<vmem>>, vector<1x8x128xf32>,
    %c2_i32 = arith.constant 2 : i32
    %75 = arith.index_cast %c2_i32 : i32 to index
    %c0_24 = arith.constant 0 : index
    %c0_25 = arith.constant 0 : index
    %76 = vector.load %arg2[%75, %c0_24, %c0_25] : memref<4x8x512xf32, #tpu.memory_space<vmem>>, vector<1x8x512xf32>
    %77 = vector.shape_cast %76 : vector<1x8x512xf32> to vector<8x512xf32>
    %c0_26 = arith.constant 0 : index
    %c0_27 = arith.constant 0 : index
    %78 = vector.load %arg3[%c0_26, %c0_27] : memref<128x512xf32, #tpu.memory_space<vmem>>, vector<128x512xf32>
    %cst_28 = arith.constant dense<0.000000e+00> : vector<8x512xf32>
    %79 = tpu.matmul %70, %78, %cst_28 {dimension_numbers = #tpu.dot_dimension_numbers<[1], [0], [0], [1], [0, 0, 1, 1], [], []>} : vector<8x128xf32>, vector<128x512xf32>, vector<8x512xf32> -> vector<8x512xf32>
    %80 = arith.addf %77, %79 : vector<8x512xf32>
    %81 = vector.extract_strided_slice %80 {offsets = [0, 0], sizes = [8, 128], strides = [1, 1]} : vector<8x512xf32> to vector<8x128xf32>
    %82 = arith.negf %81 : vector<8x128xf32>
    %83 = math.exp %82 : vector<8x128xf32>
    %cst_29 = arith.constant 1.000000e+00 : f32
    %84 = vector.broadcast %cst_29 : f32 to vector<8x128xf32>
    %85 = arith.addf %84, %83 : vector<8x128xf32>
    %86 = arith.divf %84, %85 : vector<8x128xf32>
    %87 = vector.extract_strided_slice %80 {offsets = [0, 128], sizes = [8, 128], strides = [1, 1]} : vector<8x512xf32> to vector<8x128xf32>
    %88 = arith.negf %87 : vector<8x128xf32>
    %89 = math.exp %88 : vector<8x128xf32>
    %cst_30 = arith.constant 1.000000e+00 : f32
    %90 = vector.broadcast %cst_30 : f32 to vector<8x128xf32>
    %91 = arith.addf %90, %89 : vector<8x128xf32>
    %92 = arith.divf %90, %91 : vector<8x128xf32>
    %93 = vector.extract_strided_slice %80 {offsets = [0, 256], sizes = [8, 128], strides = [1, 1]} : vector<8x512xf32> to vector<8x128xf32>
    %94 = math.tanh %93 : vector<8x128xf32>
    %95 = vector.extract_strided_slice %80 {offsets = [0, 384], sizes = [8, 128], strides = [1, 1]} : vector<8x512xf32> to vector<8x128xf32>
    %96 = arith.negf %95 : vector<8x128xf32>
    %97 = math.exp %96 : vector<8x128xf32>
    %cst_31 = arith.constant 1.000000e+00 : f32
    %98 = vector.broadcast %cst_31 : f32 to vector<8x128xf32>
    %99 = arith.addf %98, %97 : vector<8x128xf32>
    %100 = arith.divf %98, %99 : vector<8x128xf32>
    %101 = arith.mulf %92, %68 : vector<8x128xf32>
    %102 = arith.mulf %86, %94 : vector<8x128xf32>
    %103 = arith.addf %101, %102 : vector<8x128xf32>
    %104 = math.tanh %103 : vector<8x128xf32>
    %105 = arith.mulf %100, %104 : vector<8x128xf32>
    %106 = arith.index_cast %c2_i32 : i32 to index
    %c0_32 = arith.constant 0 : index
    %c0_33 = arith.constant 0 : index
    %107 = vector.load %arg4[%106, %c0_32, %c0_33] : memref<4x8x128xf32, #tpu.memory_space<vmem>>, vector<1x8x128xf32>
    %108 = vector.shape_cast %107 : vector<1x8x128xf32> to vector<8x128xf32>
    %109 = vector.shape_cast %105 : vector<8x128xf32> to vector<1x8x128xf32>
    tpu.vector_store %arg4[%106, %c0_32, %c0_33], %109 {strides = array<i32>} : memref<4x8x128xf32, #tpu.memory_space<vmem>>, vector<1x8x128xf32>,
    %c3_i32 = arith.constant 3 : i32
    %110 = arith.index_cast %c3_i32 : i32 to index
    %c0_34 = arith.constant 0 : index
    %c0_35 = arith.constant 0 : index
    %111 = vector.load %arg2[%110, %c0_34, %c0_35] : memref<4x8x512xf32, #tpu.memory_space<vmem>>, vector<1x8x512xf32>
    %112 = vector.shape_cast %111 : vector<1x8x512xf32> to vector<8x512xf32>
    %c0_36 = arith.constant 0 : index
    %c0_37 = arith.constant 0 : index
    %113 = vector.load %arg3[%c0_36, %c0_37] : memref<128x512xf32, #tpu.memory_space<vmem>>, vector<128x512xf32>
    %cst_38 = arith.constant dense<0.000000e+00> : vector<8x512xf32>
    %114 = tpu.matmul %105, %113, %cst_38 {dimension_numbers = #tpu.dot_dimension_numbers<[1], [0], [0], [1], [0, 0, 1, 1], [], []>} : vector<8x128xf32>, vector<128x512xf32>, vector<8x512xf32> -> vector<8x512xf32>
    %115 = arith.addf %112, %114 : vector<8x512xf32>
    %116 = vector.extract_strided_slice %115 {offsets = [0, 0], sizes = [8, 128], strides = [1, 1]} : vector<8x512xf32> to vector<8x128xf32>
    %117 = arith.negf %116 : vector<8x128xf32>
    %118 = math.exp %117 : vector<8x128xf32>
    %cst_39 = arith.constant 1.000000e+00 : f32
    %119 = vector.broadcast %cst_39 : f32 to vector<8x128xf32>
    %120 = arith.addf %119, %118 : vector<8x128xf32>
    %121 = arith.divf %119, %120 : vector<8x128xf32>
    %122 = vector.extract_strided_slice %115 {offsets = [0, 128], sizes = [8, 128], strides = [1, 1]} : vector<8x512xf32> to vector<8x128xf32>
    %123 = arith.negf %122 : vector<8x128xf32>
    %124 = math.exp %123 : vector<8x128xf32>
    %cst_40 = arith.constant 1.000000e+00 : f32
    %125 = vector.broadcast %cst_40 : f32 to vector<8x128xf32>
    %126 = arith.addf %125, %124 : vector<8x128xf32>
    %127 = arith.divf %125, %126 : vector<8x128xf32>
    %128 = vector.extract_strided_slice %115 {offsets = [0, 256], sizes = [8, 128], strides = [1, 1]} : vector<8x512xf32> to vector<8x128xf32>
    %129 = math.tanh %128 : vector<8x128xf32>
    %130 = vector.extract_strided_slice %115 {offsets = [0, 384], sizes = [8, 128], strides = [1, 1]} : vector<8x512xf32> to vector<8x128xf32>
    %131 = arith.negf %130 : vector<8x128xf32>
    %132 = math.exp %131 : vector<8x128xf32>
    %cst_41 = arith.constant 1.000000e+00 : f32
    %133 = vector.broadcast %cst_41 : f32 to vector<8x128xf32>
    %134 = arith.addf %133, %132 : vector<8x128xf32>
    %135 = arith.divf %133, %134 : vector<8x128xf32>
    %136 = arith.mulf %127, %103 : vector<8x128xf32>
    %137 = arith.mulf %121, %129 : vector<8x128xf32>
    %138 = arith.addf %136, %137 : vector<8x128xf32>
    %139 = math.tanh %138 : vector<8x128xf32>
    %140 = arith.mulf %135, %139 : vector<8x128xf32>
    %141 = arith.index_cast %c3_i32 : i32 to index
    %c0_42 = arith.constant 0 : index
    %c0_43 = arith.constant 0 : index
    %142 = vector.load %arg4[%141, %c0_42, %c0_43] : memref<4x8x128xf32, #tpu.memory_space<vmem>>, vector<1x8x128xf32>
    %143 = vector.shape_cast %142 : vector<1x8x128xf32> to vector<8x128xf32>
    %144 = vector.shape_cast %140 : vector<8x128xf32> to vector<1x8x128xf32>
    tpu.vector_store %arg4[%141, %c0_42, %c0_43], %144 {strides = array<i32>} : memref<4x8x128xf32, #tpu.memory_space<vmem>>, vector<1x8x128xf32>,
    %c4_i32 = arith.constant 4 : i32
    %c0_44 = arith.constant 0 : index
    %c0_45 = arith.constant 0 : index
    %145 = vector.load %arg5[%c0_44, %c0_45] : memref<8x128xf32, #tpu.memory_space<vmem>>, vector<8x128xf32>
    tpu.vector_store %arg5[%c0_44, %c0_45], %140 {strides = array<i32>} : memref<8x128xf32, #tpu.memory_space<vmem>>, vector<8x128xf32>,
    %c0_46 = arith.constant 0 : index
    %c0_47 = arith.constant 0 : index
    %146 = vector.load %arg6[%c0_46, %c0_47] : memref<8x128xf32, #tpu.memory_space<vmem>>, vector<8x128xf32>
    tpu.vector_store %arg6[%c0_46, %c0_47], %138 {strides = array<i32>} : memref<8x128xf32, #tpu.memory_space<vmem>>, vector<8x128xf32>,
    return
  }
  func.func @transform_0(%arg0: i32, %arg1: i32) -> (i32, i32, i32) {
    %c0_i32 = arith.constant 0 : i32
    %c0_i32_0 = arith.constant 0 : i32
    return %arg1, %arg0, %c0_i32 : i32, i32, i32
  }
  func.func @transform_1(%arg0: i32, %arg1: i32) -> (i32, i32) {
    %c0_i32 = arith.constant 0 : i32
    %c0_i32_0 = arith.constant 0 : i32
    %c0_i32_1 = arith.constant 0 : i32
    return %c0_i32, %c0_i32_0 : i32, i32
  }
  func.func @transform_2(%arg0: i32, %arg1: i32) -> (i32, i32, i32) {
    %c0_i32 = arith.constant 0 : i32
    %c0_i32_0 = arith.constant 0 : i32
    return %arg1, %arg0, %c0_i32 : i32, i32, i32
  }
}

</mosaic_0001>

<llo_original>
// kernel: tpu_custom_call.1
$region0: #{tpu_custom_call.1}
  #allocation0 [shape = 'u32[]', space=smem, size = 0x4, offset = 0x4, fixed_abs, tag = 'smem constant byte address 0x4 - core index']
  #allocation1 [shape = 'u32[144,128]{1,0:T(1,128)}', space=vmem, size = 0x12000, scoped, tag = 'internal scratch']
  #allocation2 [shape = 'f32[8,128]{1,0:T(8,128)}', space=vmem, size = 0x1000, scoped, tag = 'scratch operand']
  #allocation3 [shape = 'f32[8,128]{1,0:T(8,128)}', space=vmem, size = 0x1000, scoped, tag = 'scratch operand']
  %s0 = inlined_call_operand.hbm [shape: f32[8,8,512], index: 0, kind: input, shape index: {}]
  %s1 = inlined_call_operand.hbm [shape: f32[128,512], index: 1, kind: input, shape index: {}]
  %s2 = inlined_call_operand.hbm [shape: f32[8,8,128], index: 2, kind: output, shape index: {}]
  %s3 = sld [smem:[#allocation0]]
  $region53: #{tpu_custom_call.1} parent=0
    _
  %s5 = ssub.s32 1, %s3
  %s6 = scalar_select 0, %s5, %s3
  $region1: #{tpu_custom_call.1} parent=0
    #allocation4 [shape = 'u8[131072]{0}', space=vmem, size = 0x20000, scoped, tag = 'input window, operand 0']
    #allocation5 [shape = 's32[2]{0}', space=sflag, size = 0x8, scoped, tag = 'scoped memory for tpu_custom_call.1']
    #allocation6 [shape = 's32[2]{0}', space=sflag, size = 0x8, scoped, tag = 'scoped memory for tpu_custom_call.1']
    #allocation7 [shape = 'u8[262144]{0}', space=vmem, size = 0x40000, scoped, tag = 'input window, operand 1, single buffered']
    #allocation8 [shape = 's32[1]{0}', space=sflag, size = 0x4, scoped, tag = 'scoped memory for tpu_custom_call.1']
    #allocation9 [shape = 'u8[32768]{0}', space=vmem, size = 0x8000, scoped, tag = 'output window, operand 0']
    %7 = vsyncpa [#allocation5], 0
    %s8 = scalar_lea.sflag [#allocation5], 1
    %9 = vsyncpa %s8, 0
    %10 = vsyncpa [#allocation8], 0
    %11 = vsyncpa [#allocation6], 0
    %s12 = scalar_lea.sflag [#allocation6], 1
    %13 = vsyncpa %s12, 0
    loop: start=0, step=1, limit=4
    $region2: #{tpu_custom_call.1} parent=1 // loop_pre_header
      _
    $region3: #{tpu_custom_call.1} parent=1 // loop_header
      %s15 = sphi 0, %s19
      %p16 = scmp.ge.s32.totalorder %s15, 4
      %s22 = sphi 0, %s34
      %s23 = sphi 0, %s30
      %s24 = sphi 0, %s22
      %s25 = sphi 0, %s23
      %s26 = sphi 0, %s24
      %s27 = sphi 0, %s25
      %s39 = sphi 0, %s41
      %s42 = sphi 0, %s39
      %s43 = sphi 0, %s42
      %s59 = sphi 0, %s43
      %s63 = sphi 0, %s63
      %s65 = sphi 0, %s63
      %s66 = sphi 0, %s65
      %s80 = sphi 0, %s66
      %s88 = sphi 0, %s90
      %s91 = sphi 0, %s88
      %s92 = sphi 0, %s91
      %s108 = sphi 0, %s92
    $region4: #{tpu_custom_call.1} parent=1 // loop_header_branch
      %18 = sbr.rel (%p16) target = $region8
    $region5: #{tpu_custom_call.1} parent=1 // loop_body
      %s20 = ssub.s32 %s15, 1
      %s21 = ssub.s32 %s15, 2
      %s28 = sadd.s32 1, %s23
      %p29 = scmp.ge.s32.totalorder %s28, 2
      %s30 = scalar_select %p29, 0, %s28
      %s31 = sadd.s32 1, %s22
      %s32 = scalar_select %p29, %s31, %s22
      %p33 = scmp.ge.s32.totalorder %s32, 1
      %s34 = scalar_select %p33, 0, %s32
      %s35 = ssub.s32 %s23, %s30
      %s36 = ssub.s32 %s22, %s34
      %s37 = sor.u32 %s35, %s36
      %p38 = scmp.eq.s32.totalorder %s37, 0
      %s40 = sadd.s32 %s39, 1
      %s41 = scalar_select %p38, %s39, %s40
      %p44 = pneg %p38
      %p45 = scmp.eq.s32.totalorder %s15, 1
      %p46 = por %p44, %p45
      %p47 = scmp.ne.s32.totalorder %s39, %s42
      %p48 = scmp.eq.s32.totalorder %s15, 0
      %p49 = por %p47, %p48
      %p50 = scmp.ne.s32.totalorder %s39, %s42
      %p51 = scmp.eq.s32.totalorder %s20, 1
      %p52 = por %p50, %p51
      %p53 = scmp.ne.s32.totalorder %s42, %s43
      %p54 = scmp.eq.s32.totalorder %s20, 0
      %p55 = por %p53, %p54
      %p56 = scmp.ne.s32.totalorder %s42, %s43
      %p57 = scmp.eq.s32.totalorder %s21, 1
      %p58 = por %p56, %p57
      %p60 = scmp.ne.s32.totalorder %s43, %s59
      %p61 = scmp.eq.s32.totalorder %s21, 0
      %p62 = por %p60, %p61
      %s64 = sadd.s32 %s63, 1
      %p67 = scmp.eq.s32.totalorder %s15, 1
      %p68 = scmp.ne.s32.totalorder %s63, %s65
      %p69 = scmp.eq.s32.totalorder %s15, 0
      %p70 = por %p68, %p69
      %p71 = scmp.ne.s32.totalorder %s63, %s65
      %p72 = scmp.eq.s32.totalorder %s20, 1
      %p73 = por %p71, %p72
      %p74 = scmp.ne.s32.totalorder %s65, %s66
      %p75 = scmp.eq.s32.totalorder %s20, 0
      %p76 = por %p74, %p75
      %p77 = scmp.ne.s32.totalorder %s65, %s66
      %p78 = scmp.eq.s32.totalorder %s21, 1
      %p79 = por %p77, %p78
      %p81 = scmp.ne.s32.totalorder %s66, %s80
      %p82 = scmp.eq.s32.totalorder %s21, 0
      %p83 = por %p81, %p82
      %s84 = ssub.s32 %s23, %s30
      %s85 = ssub.s32 %s22, %s34
      %s86 = sor.u32 %s84, %s85
      %p87 = scmp.eq.s32.totalorder %s86, 0
      %s89 = sadd.s32 %s88, 1
      %s90 = scalar_select %p87, %s88, %s89
      %p93 = pneg %p87
      %p94 = scmp.eq.s32.totalorder %s15, 1
      %p95 = por %p93, %p94
      %p96 = scmp.ne.s32.totalorder %s88, %s91
      %p97 = scmp.eq.s32.totalorder %s15, 0
      %p98 = por %p96, %p97
      %p99 = scmp.ne.s32.totalorder %s88, %s91
      %p100 = scmp.eq.s32.totalorder %s20, 1
      %p101 = por %p99, %p100
      %p102 = scmp.ne.s32.totalorder %s91, %s92
      %p103 = scmp.eq.s32.totalorder %s20, 0
      %p104 = por %p102, %p103
      %p105 = scmp.ne.s32.totalorder %s91, %s92
      %p106 = scmp.eq.s32.totalorder %s21, 1
      %p107 = por %p105, %p106
      %p109 = scmp.ne.s32.totalorder %s92, %s108
      %p110 = scmp.eq.s32.totalorder %s21, 0
      %p111 = por %p109, %p110
      %p112 = scmp.le.s32.totalorder 1, %s15
      %p113 = scmp.lt.s32.totalorder %s15, 3
      %p114 = pnand %p112, %p113
      %p115 = pneg %p114
      // Predicated region
      $region9: #{tpu_custom_call.1} parent=5 // pred_check
        _
      $region10: #{tpu_custom_call.1} parent=5 // pred_check_branch
        %117 = sbr.rel (%p114) target = $region12
      $region11: #{tpu_custom_call.1} parent=5 // pred_region
        %s118 = ssub.s32 %s15, 1
        // Predicated region
        $region13: #{tpu_custom_call.1} parent=11 // pred_check
          %p119 = pneg %p76
        $region14: #{tpu_custom_call.1} parent=11 // pred_check_branch
          %121 = sbr.rel (%p119) target = $region16
        $region15: #{tpu_custom_call.1} parent=11 // pred_region
          %s123 = ssub.s32 8192, 8192
          %124 = vsyncadd [#allocation8], %s123
          %s125 = sshll.u32 [#allocation7], 4
          %s126 = int_to_ptr.vmem [resolvable:$true] %s125
          %131 = dma.hbm_to_vmem [thread:$0]  %s1, 8192, %s126, [#allocation8], 512, 512, 32
        $region16: #{tpu_custom_call.1} parent=11 // pred_fallthru
          _
      $region12: #{tpu_custom_call.1} parent=5 // pred_fallthru
        _
      %p132 = scmp.lt.s32.totalorder %s15, 2
      // Predicated region
      $region17: #{tpu_custom_call.1} parent=5 // pred_check
        %p133 = pneg %p132
      $region18: #{tpu_custom_call.1} parent=5 // pred_check_branch
        %135 = sbr.rel (%p133) target = $region20
      $region19: #{tpu_custom_call.1} parent=5 // pred_region
        // Predicated region
        $region21: #{tpu_custom_call.1} parent=19 // pred_check
          %p136 = pneg %p49
        $region22: #{tpu_custom_call.1} parent=19 // pred_check_branch
          %138 = sbr.rel (%p136) target = $region24
        $region23: #{tpu_custom_call.1} parent=19 // pred_region
          %s139 = sand.u32 %s39, 1
          %s140 = scalar_lea.sflag [#allocation5], %s139
          %s141 = sand.u32 %s39, 1
          %s142 = smul.addr %s141, 128
          %s143 = scalar_lea.vmem [#allocation4], %s142
          %s144 = smul.u32 4, %s23
          %s146 = ssub.s32 2048, 2048
          %147 = vsyncadd %s140, %s146
          %s148 = smul.addr %s22, 4
          %s149 = smul.addr %s144, 4
          %s150 = sadd.s32 %s148, %s149
          %s151 = smul.addr %s150, 128
          %s152 = scalar_lea.hbm %s0, %s151
          %s153 = sshll.u32 %s143, 4
          %s154 = int_to_ptr.vmem [resolvable:$true] %s153
          %159 = dma.hbm_to_vmem [thread:$0]  %s152, 2048, %s154, %s140, 512, 512, 32
        $region24: #{tpu_custom_call.1} parent=19 // pred_fallthru
          _
      $region20: #{tpu_custom_call.1} parent=5 // pred_fallthru
        _
      %p160 = scmp.le.s32.totalorder 1, %s15
      %p161 = scmp.lt.s32.totalorder %s15, 3
      %p162 = pnand %p160, %p161
      %p163 = pneg %p162
      // Predicated region
      $region25: #{tpu_custom_call.1} parent=5 // pred_check
        _
      $region26: #{tpu_custom_call.1} parent=5 // pred_check_branch
        %165 = sbr.rel (%p162) target = $region28
      $region27: #{tpu_custom_call.1} parent=5 // pred_region
        %s166 = ssub.s32 %s15, 1
        %s167 = sand.u32 %s42, 1
        %s168 = scalar_lea.sflag [#allocation5], %s167
        %s169 = sand.u32 %s42, 1
        %s170 = smul.addr %s169, 128
        %s171 = scalar_lea.vmem [#allocation4], %s170
        // Predicated region
        $region29: #{tpu_custom_call.1} parent=27 // pred_check
          %p172 = pneg %p55
        $region30: #{tpu_custom_call.1} parent=27 // pred_check_branch
          %174 = sbr.rel (%p172) target = $region32
        $region31: #{tpu_custom_call.1} parent=27 // pred_region
          %175 = dma.done %s168, 2048
        $region32: #{tpu_custom_call.1} parent=27 // pred_fallthru
          _
        // Predicated region
        $region33: #{tpu_custom_call.1} parent=27 // pred_check
          %p176 = pneg %p76
        $region34: #{tpu_custom_call.1} parent=27 // pred_check_branch
          %178 = sbr.rel (%p176) target = $region36
        $region35: #{tpu_custom_call.1} parent=27 // pred_region
          %179 = dma.done [#allocation8], 8192
        $region36: #{tpu_custom_call.1} parent=27 // pred_fallthru
          _
        %s180 = sand.u32 %s42, 1
        %s181 = scalar_lea.sflag [#allocation5], %s180
        %s182 = sand.u32 %s42, 1
        %s183 = smul.addr %s182, 128
        %s184 = scalar_lea.vmem [#allocation4], %s183
        %p185 = pneg %p55
        %p186 = pneg %p52
        %p187 = pneg %p76
        %p188 = pneg %p73
        %p189 = pneg %p104
        %p190 = pneg %p101
        %s191 = sand.u32 %s91, 1
        %s192 = scalar_lea.sflag [#allocation6], %s191
        %s193 = sand.u32 %s91, 1
        %s194 = smul.addr %s193, 32
        %s195 = scalar_lea.vmem [#allocation9], %s194
        %s196 = smul.u32 4, %s25
        %s197 = smul.u32 4, %s25
        %p198 = scmp.eq.s32.totalorder %s25, 0
        // Predicated region
        $region37: #{tpu_custom_call.1} parent=27 // pred_check
          %p199 = pneg %p198
        $region38: #{tpu_custom_call.1} parent=27 // pred_check_branch
          %201 = sbr.rel (%p199) target = $region40
        $region39: #{tpu_custom_call.1} parent=27 // pred_region
          %202 = vst [vmem:[#allocation2] sm:$0xff] 0.0
          %203 = vst [vmem:[#allocation3] sm:$0xff] 0.0
        $region40: #{tpu_custom_call.1} parent=27 // pred_fallthru
          _
        %v204 = vld [vmem:[#allocation2] sm:$0xff]
        %v205 = vld [vmem:[#allocation3] sm:$0xff]
        %v206 = vld [vmem:[%s171] sm:$0xff]
        %v207 = vld [vmem:[%s171 + $0x8] sm:$0xff]
        %v208 = vld [vmem:[%s171 + $0x10] sm:$0xff]
        %v209 = vld [vmem:[%s171 + $0x18] sm:$0xff]
        %v210 = vld [vmem:[#allocation7] sm:$0xff]
        %v211 = vld [vmem:[#allocation7 + $0x8] sm:$0xff]
        %v212 = vld [vmem:[#allocation7 + $0x10] sm:$0xff]
        %v213 = vld [vmem:[#allocation7 + $0x18] sm:$0xff]
        %v214 = vld [vmem:[#allocation7 + $0x20] sm:$0xff]
        %v215 = vld [vmem:[#allocation7 + $0x28] sm:$0xff]
        %v216 = vld [vmem:[#allocation7 + $0x30] sm:$0xff]
        %v217 = vld [vmem:[#allocation7 + $0x38] sm:$0xff]
        %v218 = vld [vmem:[#allocation7 + $0x40] sm:$0xff]
        %v219 = vld [vmem:[#allocation7 + $0x48] sm:$0xff]
        %v220 = vld [vmem:[#allocation7 + $0x50] sm:$0xff]
        %v221 = vld [vmem:[#allocation7 + $0x58] sm:$0xff]
        %v222 = vld [vmem:[#allocation7 + $0x60] sm:$0xff]
        %v223 = vld [vmem:[#allocation7 + $0x68] sm:$0xff]
        %v224 = vld [vmem:[#allocation7 + $0x70] sm:$0xff]
        %v225 = vld [vmem:[#allocation7 + $0x78] sm:$0xff]
        %v226 = vld [vmem:[#allocation7 + $0x80] sm:$0xff]
        %v227 = vld [vmem:[#allocation7 + $0x88] sm:$0xff]
        %v228 = vld [vmem:[#allocation7 + $0x90] sm:$0xff]
        %v229 = vld [vmem:[#allocation7 + $0x98] sm:$0xff]
        %v230 = vld [vmem:[#allocation7 + $0xa0] sm:$0xff]
        %v231 = vld [vmem:[#allocation7 + $0xa8] sm:$0xff]
        %v232 = vld [vmem:[#allocation7 + $0xb0] sm:$0xff]
        %v233 = vld [vmem:[#allocation7 + $0xb8] sm:$0xff]
        %v234 = vld [vmem:[#allocation7 + $0xc0] sm:$0xff]
        %v235 = vld [vmem:[#allocation7 + $0xc8] sm:$0xff]
        %v236 = vld [vmem:[#allocation7 + $0xd0] sm:$0xff]
        %v237 = vld [vmem:[#allocation7 + $0xd8] sm:$0xff]
        %v238 = vld [vmem:[#allocation7 + $0xe0] sm:$0xff]
        %v239 = vld [vmem:[#allocation7 + $0xe8] sm:$0xff]
        %v240 = vld [vmem:[#allocation7 + $0xf0] sm:$0xff]
        %v241 = vld [vmem:[#allocation7 + $0xf8] sm:$0xff]
        %v242 = vld [vmem:[#allocation7 + $0x100] sm:$0xff]
        %v243 = vld [vmem:[#allocation7 + $0x108] sm:$0xff]
        %v244 = vld [vmem:[#allocation7 + $0x110] sm:$0xff]
        %v245 = vld [vmem:[#allocation7 + $0x118] sm:$0xff]
        %v246 = vld [vmem:[#allocation7 + $0x120] sm:$0xff]
        %v247 = vld [vmem:[#allocation7 + $0x128] sm:$0xff]
        %v248 = vld [vmem:[#allocation7 + $0x130] sm:$0xff]
        %v249 = vld [vmem:[#allocation7 + $0x138] sm:$0xff]
        %v250 = vld [vmem:[#allocation7 + $0x140] sm:$0xff]
        %v251 = vld [vmem:[#allocation7 + $0x148] sm:$0xff]
        %v252 = vld [vmem:[#allocation7 + $0x150] sm:$0xff]
        %v253 = vld [vmem:[#allocation7 + $0x158] sm:$0xff]
        %v254 = vld [vmem:[#allocation7 + $0x160] sm:$0xff]
        %v255 = vld [vmem:[#allocation7 + $0x168] sm:$0xff]
        %v256 = vld [vmem:[#allocation7 + $0x170] sm:$0xff]
        %v257 = vld [vmem:[#allocation7 + $0x178] sm:$0xff]
        %v258 = vld [vmem:[#allocation7 + $0x180] sm:$0xff]
        %v259 = vld [vmem:[#allocation7 + $0x188] sm:$0xff]
        %v260 = vld [vmem:[#allocation7 + $0x190] sm:$0xff]
        %v261 = vld [vmem:[#allocation7 + $0x198] sm:$0xff]
        %v262 = vld [vmem:[#allocation7 + $0x1a0] sm:$0xff]
        %v263 = vld [vmem:[#allocation7 + $0x1a8] sm:$0xff]
        %v264 = vld [vmem:[#allocation7 + $0x1b0] sm:$0xff]
        %v265 = vld [vmem:[#allocation7 + $0x1b8] sm:$0xff]
        %v266 = vld [vmem:[#allocation7 + $0x1c0] sm:$0xff]
        %v267 = vld [vmem:[#allocation7 + $0x1c8] sm:$0xff]
        %v268 = vld [vmem:[#allocation7 + $0x1d0] sm:$0xff]
        %v269 = vld [vmem:[#allocation7 + $0x1d8] sm:$0xff]
        %v270 = vld [vmem:[#allocation7 + $0x1e0] sm:$0xff]
        %v271 = vld [vmem:[#allocation7 + $0x1e8] sm:$0xff]
        %v272 = vld [vmem:[#allocation7 + $0x1f0] sm:$0xff]
        %v273 = vld [vmem:[#allocation7 + $0x1f8] sm:$0xff]
        %274 = vmatprep.subr.mxu0 %v211
        %275 = vmatpush1.msra.mxu0 %v210
        %276 = vmatprep.subr.mxu0 %v215
        %277 = vmatpush1.msra.mxu0 %v214
        %278 = vmatprep.subr.mxu0 %v219
        %279 = vmatpush1.msra.mxu0 %v218
        %280 = vmatprep.subr.mxu0 %v223
        %281 = vmatpush1.msra.mxu0 %v222
        %282 = vmatprep.subr.mxu0 %v227
        %283 = vmatpush1.msra.mxu0 %v226
        %284 = vmatprep.subr.mxu0 %v231
        %285 = vmatpush1.msra.mxu0 %v230
        %286 = vmatprep.subr.mxu0 %v235
        %287 = vmatpush1.msra.mxu0 %v234
        %288 = vmatprep.subr.mxu0 %v239
        %289 = vmatpush1.msra.mxu0 %v238
        %290 = vmatprep.subr.mxu0 %v243
        %291 = vmatpush1.msra.mxu0 %v242
        %292 = vmatprep.subr.mxu0 %v247
        %293 = vmatpush1.msra.mxu0 %v246
        %294 = vmatprep.subr.mxu0 %v251
        %295 = vmatpush1.msra.mxu0 %v250
        %296 = vmatprep.subr.mxu0 %v255
        %297 = vmatpush1.msra.mxu0 %v254
        %298 = vmatprep.subr.mxu0 %v259
        %299 = vmatpush1.msra.mxu0 %v258
        %300 = vmatprep.subr.mxu0 %v263
        %301 = vmatpush1.msra.mxu0 %v262
        %302 = vmatprep.subr.mxu0 %v267
        %303 = vmatpush1.msra.mxu0 %v266
        %304 = vmatprep.subr.mxu0 %v271
        %305 = vmatpush1.msra.mxu0 %v270
        %306 = vmatprep.subr.mxu0 0.0
        %307 = vmatpush1.msra.mxu0 0.0
        %308 = vmatprep.subr.mxu0 0.0
        %309 = vmatpush1.msra.mxu0 0.0
        %310 = vmatprep.subr.mxu0 0.0
        %311 = vmatpush1.msra.mxu0 0.0
        %312 = vmatprep.subr.mxu0 0.0
        %313 = vmatpush1.msra.mxu0 0.0
        %314 = vmatprep.subr.mxu0 0.0
        %315 = vmatpush1.msra.mxu0 0.0
        %316 = vmatprep.subr.mxu0 0.0
        %317 = vmatpush1.msra.mxu0 0.0
        %318 = vmatprep.subr.mxu0 0.0
        %319 = vmatpush1.msra.mxu0 0.0
        %320 = vmatprep.subr.mxu0 0.0
        %321 = vmatpush1.msra.mxu0 0.0
        %322 = vmatprep.subr.mxu0 0.0
        %323 = vmatpush1.msra.mxu0 0.0
        %324 = vmatprep.subr.mxu0 0.0
        %325 = vmatpush1.msra.mxu0 0.0
        %326 = vmatprep.subr.mxu0 0.0
        %327 = vmatpush1.msra.mxu0 0.0
        %328 = vmatprep.subr.mxu0 0.0
        %329 = vmatpush1.msra.mxu0 0.0
        %330 = vmatprep.subr.mxu0 0.0
        %331 = vmatpush1.msra.mxu0 0.0
        %332 = vmatprep.subr.mxu0 0.0
        %333 = vmatpush1.msra.mxu0 0.0
        %334 = vmatprep.subr.mxu0 0.0
        %335 = vmatpush1.msra.mxu0 0.0
        %336 = vmatprep.subr.mxu0 0.0
        %337 = vmatpush1.msra.mxu0 0.0
        %338 = vmatprep.mubr.f32.mxu0 0.0
        %339 = vmatmul.mubr.f32.gmra.mrb[0].mxu0 %v204
        %v340 = vpop.f32.mrb[0].mxu0
        %v341 = vadd.f32 0.0, %v340
        %v342 = vpop.f32.mrb[0].mxu0
        %v343 = vadd.f32 0.0, %v342
        %344 = vdwg.mxu0
        %345 = vmatprep.subr.mxu0 %v213
        %346 = vmatpush1.msra.mxu0 %v212
        %347 = vmatprep.subr.mxu0 %v217
        %348 = vmatpush1.msra.mxu0 %v216
        %349 = vmatprep.subr.mxu0 %v221
        %350 = vmatpush1.msra.mxu0 %v220
        %351 = vmatprep.subr.mxu0 %v225
        %352 = vmatpush1.msra.mxu0 %v224
        %353 = vmatprep.subr.mxu0 %v229
        %354 = vmatpush1.msra.mxu0 %v228
        %355 = vmatprep.subr.mxu0 %v233
        %356 = vmatpush1.msra.mxu0 %v232
        %357 = vmatprep.subr.mxu0 %v237
        %358 = vmatpush1.msra.mxu0 %v236
        %359 = vmatprep.subr.mxu0 %v241
        %360 = vmatpush1.msra.mxu0 %v240
        %361 = vmatprep.subr.mxu0 %v245
        %362 = vmatpush1.msra.mxu0 %v244
        %363 = vmatprep.subr.mxu0 %v249
        %364 = vmatpush1.msra.mxu0 %v248
        %365 = vmatprep.subr.mxu0 %v253
        %366 = vmatpush1.msra.mxu0 %v252
        %367 = vmatprep.subr.mxu0 %v257
        %368 = vmatpush1.msra.mxu0 %v256
        %369 = vmatprep.subr.mxu0 %v261
        %370 = vmatpush1.msra.mxu0 %v260
        %371 = vmatprep.subr.mxu0 %v265
        %372 = vmatpush1.msra.mxu0 %v264
        %373 = vmatprep.subr.mxu0 %v269
        %374 = vmatpush1.msra.mxu0 %v268
        %375 = vmatprep.subr.mxu0 %v273
        %376 = vmatpush1.msra.mxu0 %v272
        %377 = vmatprep.subr.mxu0 0.0
        %378 = vmatpush1.msra.mxu0 0.0
        %379 = vmatprep.subr.mxu0 0.0
        %380 = vmatpush1.msra.mxu0 0.0
        %381 = vmatprep.subr.mxu0 0.0
        %382 = vmatpush1.msra.mxu0 0.0
        %383 = vmatprep.subr.mxu0 0.0
        %384 = vmatpush1.msra.mxu0 0.0
        %385 = vmatprep.subr.mxu0 0.0
        %386 = vmatpush1.msra.mxu0 0.0
        %387 = vmatprep.subr.mxu0 0.0
        %388 = vmatpush1.msra.mxu0 0.0
        %389 = vmatprep.subr.mxu0 0.0
        %390 = vmatpush1.msra.mxu0 0.0
        %391 = vmatprep.subr.mxu0 0.0
        %392 = vmatpush1.msra.mxu0 0.0
        %393 = vmatprep.subr.mxu0 0.0
        %394 = vmatpush1.msra.mxu0 0.0
        %395 = vmatprep.subr.mxu0 0.0
        %396 = vmatpush1.msra.mxu0 0.0
        %397 = vmatprep.subr.mxu0 0.0
        %398 = vmatpush1.msra.mxu0 0.0
        %399 = vmatprep.subr.mxu0 0.0
        %400 = vmatpush1.msra.mxu0 0.0
        %401 = vmatprep.subr.mxu0 0.0
        %402 = vmatpush1.msra.mxu0 0.0
        %403 = vmatprep.subr.mxu0 0.0
        %404 = vmatpush1.msra.mxu0 0.0
        %405 = vmatprep.subr.mxu0 0.0
        %406 = vmatpush1.msra.mxu0 0.0
        %407 = vmatprep.subr.mxu0 0.0
        %408 = vmatpush1.msra.mxu0 0.0
        %409 = vmatprep.mubr.f32.mxu0 0.0
        %410 = vmatmul.mubr.f32.gmra.mrb[0].mxu0 %v204
        %v411 = vpop.f32.mrb[0].mxu0
        %v412 = vadd.f32 0.0, %v411
        %v413 = vpop.f32.mrb[0].mxu0
        %v414 = vadd.f32 0.0, %v413
        %415 = vdwg.mxu0
        %v416 = vadd.f32 %v206, %v341
        %v417 = vadd.f32 %v207, %v343
        %v418 = vadd.f32 %v208, %v412
        %v419 = vadd.f32 %v209, %v414
        %v420 = vxor.u32 %v416, 2147483648
        %v421 = vmul.f32 %v420, 1.442695
        %v422 = vpow.pop %v421
        %v423 = vadd.f32 %v422, 1.0
        %v424 = vrcp.pop %v423
        %v425 = vmul.f32 1.0, %v424
        %v426 = vxor.u32 %v417, 2147483648
        %v427 = vmul.f32 %v426, 1.442695
        %v428 = vpow.pop %v427
        %v429 = vadd.f32 %v428, 1.0
        %v430 = vrcp.pop %v429
        %v431 = vmul.f32 1.0, %v430
        %v432 = vtanh.pop %v418
        %v433 = vxor.u32 %v419, 2147483648
        %v434 = vmul.f32 %v433, 1.442695
        %v435 = vpow.pop %v434
        %v436 = vadd.f32 %v435, 1.0
        %v437 = vrcp.pop %v436
        %v438 = vmul.f32 1.0, %v437
        %v439 = vmul.f32 %v431, %v205
        %v440 = vmul.f32 %v425, %v432
        %v441 = vadd.f32 %v439, %v440
        %v442 = vtanh.pop %v441
        %v443 = vmul.f32 %v438, %v442
        %444 = vst [vmem:[%s195] sm:$0xff] %v443
        %s445 = scalar_lea.vmem %s171, 32 [#allocation4]
        %v446 = vld [vmem:[%s445] sm:$0xff]
        %v447 = vld [vmem:[%s445 + $0x8] sm:$0xff]
        %v448 = vld [vmem:[%s445 + $0x10] sm:$0xff]
        %v449 = vld [vmem:[%s445 + $0x18] sm:$0xff]
        %v450 = vld [vmem:[#allocation7] sm:$0xff]
        %v451 = vld [vmem:[#allocation7 + $0x8] sm:$0xff]
        %v452 = vld [vmem:[#allocation7 + $0x10] sm:$0xff]
        %v453 = vld [vmem:[#allocation7 + $0x18] sm:$0xff]
        %v454 = vld [vmem:[#allocation7 + $0x20] sm:$0xff]
        %v455 = vld [vmem:[#allocation7 + $0x28] sm:$0xff]
        %v456 = vld [vmem:[#allocation7 + $0x30] sm:$0xff]
        %v457 = vld [vmem:[#allocation7 + $0x38] sm:$0xff]
        %v458 = vld [vmem:[#allocation7 + $0x40] sm:$0xff]
        %v459 = vld [vmem:[#allocation7 + $0x48] sm:$0xff]
        %v460 = vld [vmem:[#allocation7 + $0x50] sm:$0xff]
        %v461 = vld [vmem:[#allocation7 + $0x58] sm:$0xff]
        %v462 = vld [vmem:[#allocation7 + $0x60] sm:$0xff]
        %v463 = vld [vmem:[#allocation7 + $0x68] sm:$0xff]
        %v464 = vld [vmem:[#allocation7 + $0x70] sm:$0xff]
        %v465 = vld [vmem:[#allocation7 + $0x78] sm:$0xff]
        %v466 = vld [vmem:[#allocation7 + $0x80] sm:$0xff]
        %v467 = vld [vmem:[#allocation7 + $0x88] sm:$0xff]
        %v468 = vld [vmem:[#allocation7 + $0x90] sm:$0xff]
        %v469 = vld [vmem:[#allocation7 + $0x98] sm:$0xff]
        %v470 = vld [vmem:[#allocation7 + $0xa0] sm:$0xff]
        %v471 = vld [vmem:[#allocation7 + $0xa8] sm:$0xff]
        %v472 = vld [vmem:[#allocation7 + $0xb0] sm:$0xff]
        %v473 = vld [vmem:[#allocation7 + $0xb8] sm:$0xff]
        %v474 = vld [vmem:[#allocation7 + $0xc0] sm:$0xff]
        %v475 = vld [vmem:[#allocation7 + $0xc8] sm:$0xff]
        %v476 = vld [vmem:[#allocation7 + $0xd0] sm:$0xff]
        %v477 = vld [vmem:[#allocation7 + $0xd8] sm:$0xff]
        %v478 = vld [vmem:[#allocation7 + $0xe0] sm:$0xff]
        %v479 = vld [vmem:[#allocation7 + $0xe8] sm:$0xff]
        %v480 = vld [vmem:[#allocation7 + $0xf0] sm:$0xff]
        %v481 = vld [vmem:[#allocation7 + $0xf8] sm:$0xff]
        %v482 = vld [vmem:[#allocation7 + $0x100] sm:$0xff]
        %v483 = vld [vmem:[#allocation7 + $0x108] sm:$0xff]
        %v484 = vld [vmem:[#allocation7 + $0x110] sm:$0xff]
        %v485 = vld [vmem:[#allocation7 + $0x118] sm:$0xff]
        %v486 = vld [vmem:[#allocation7 + $0x120] sm:$0xff]
        %v487 = vld [vmem:[#allocation7 + $0x128] sm:$0xff]
        %v488 = vld [vmem:[#allocation7 + $0x130] sm:$0xff]
        %v489 = vld [vmem:[#allocation7 + $0x138] sm:$0xff]
        %v490 = vld [vmem:[#allocation7 + $0x140] sm:$0xff]
        %v491 = vld [vmem:[#allocation7 + $0x148] sm:$0xff]
        %v492 = vld [vmem:[#allocation7 + $0x150] sm:$0xff]
        %v493 = vld [vmem:[#allocation7 + $0x158] sm:$0xff]
        %v494 = vld [vmem:[#allocation7 + $0x160] sm:$0xff]
        %v495 = vld [vmem:[#allocation7 + $0x168] sm:$0xff]
        %v496 = vld [vmem:[#allocation7 + $0x170] sm:$0xff]
        %v497 = vld [vmem:[#allocation7 + $0x178] sm:$0xff]
        %v498 = vld [vmem:[#allocation7 + $0x180] sm:$0xff]
        %v499 = vld [vmem:[#allocation7 + $0x188] sm:$0xff]
        %v500 = vld [vmem:[#allocation7 + $0x190] sm:$0xff]
        %v501 = vld [vmem:[#allocation7 + $0x198] sm:$0xff]
        %v502 = vld [vmem:[#allocation7 + $0x1a0] sm:$0xff]
        %v503 = vld [vmem:[#allocation7 + $0x1a8] sm:$0xff]
        %v504 = vld [vmem:[#allocation7 + $0x1b0] sm:$0xff]
        %v505 = vld [vmem:[#allocation7 + $0x1b8] sm:$0xff]
        %v506 = vld [vmem:[#allocation7 + $0x1c0] sm:$0xff]
        %v507 = vld [vmem:[#allocation7 + $0x1c8] sm:$0xff]
        %v508 = vld [vmem:[#allocation7 + $0x1d0] sm:$0xff]
        %v509 = vld [vmem:[#allocation7 + $0x1d8] sm:$0xff]
        %v510 = vld [vmem:[#allocation7 + $0x1e0] sm:$0xff]
        %v511 = vld [vmem:[#allocation7 + $0x1e8] sm:$0xff]
        %v512 = vld [vmem:[#allocation7 + $0x1f0] sm:$0xff]
        %v513 = vld [vmem:[#allocation7 + $0x1f8] sm:$0xff]
        %514 = vmatprep.subr.mxu0 %v451
        %515 = vmatpush1.msra.mxu0 %v450
        %516 = vmatprep.subr.mxu0 %v455
        %517 = vmatpush1.msra.mxu0 %v454
        %518 = vmatprep.subr.mxu0 %v459
        %519 = vmatpush1.msra.mxu0 %v458
        %520 = vmatprep.subr.mxu0 %v463
        %521 = vmatpush1.msra.mxu0 %v462
        %522 = vmatprep.subr.mxu0 %v467
        %523 = vmatpush1.msra.mxu0 %v466
        %524 = vmatprep.subr.mxu0 %v471
        %525 = vmatpush1.msra.mxu0 %v470
        %526 = vmatprep.subr.mxu0 %v475
        %527 = vmatpush1.msra.mxu0 %v474
        %528 = vmatprep.subr.mxu0 %v479
        %529 = vmatpush1.msra.mxu0 %v478
        %530 = vmatprep.subr.mxu0 %v483
        %531 = vmatpush1.msra.mxu0 %v482
        %532 = vmatprep.subr.mxu0 %v487
        %533 = vmatpush1.msra.mxu0 %v486
        %534 = vmatprep.subr.mxu0 %v491
        %535 = vmatpush1.msra.mxu0 %v490
        %536 = vmatprep.subr.mxu0 %v495
        %537 = vmatpush1.msra.mxu0 %v494
        %538 = vmatprep.subr.mxu0 %v499
        %539 = vmatpush1.msra.mxu0 %v498
        %540 = vmatprep.subr.mxu0 %v503
        %541 = vmatpush1.msra.mxu0 %v502
        %542 = vmatprep.subr.mxu0 %v507
        %543 = vmatpush1.msra.mxu0 %v506
        %544 = vmatprep.subr.mxu0 %v511
        %545 = vmatpush1.msra.mxu0 %v510
        %546 = vmatprep.subr.mxu0 0.0
        %547 = vmatpush1.msra.mxu0 0.0
        %548 = vmatprep.subr.mxu0 0.0
        %549 = vmatpush1.msra.mxu0 0.0
        %550 = vmatprep.subr.mxu0 0.0
        %551 = vmatpush1.msra.mxu0 0.0
        %552 = vmatprep.subr.mxu0 0.0
        %553 = vmatpush1.msra.mxu0 0.0
        %554 = vmatprep.subr.mxu0 0.0
        %555 = vmatpush1.msra.mxu0 0.0
        %556 = vmatprep.subr.mxu0 0.0
        %557 = vmatpush1.msra.mxu0 0.0
        %558 = vmatprep.subr.mxu0 0.0
        %559 = vmatpush1.msra.mxu0 0.0
        %560 = vmatprep.subr.mxu0 0.0
        %561 = vmatpush1.msra.mxu0 0.0
        %562 = vmatprep.subr.mxu0 0.0
        %563 = vmatpush1.msra.mxu0 0.0
        %564 = vmatprep.subr.mxu0 0.0
        %565 = vmatpush1.msra.mxu0 0.0
        %566 = vmatprep.subr.mxu0 0.0
        %567 = vmatpush1.msra.mxu0 0.0
        %568 = vmatprep.subr.mxu0 0.0
        %569 = vmatpush1.msra.mxu0 0.0
        %570 = vmatprep.subr.mxu0 0.0
        %571 = vmatpush1.msra.mxu0 0.0
        %572 = vmatprep.subr.mxu0 0.0
        %573 = vmatpush1.msra.mxu0 0.0
        %574 = vmatprep.subr.mxu0 0.0
        %575 = vmatpush1.msra.mxu0 0.0
        %576 = vmatprep.subr.mxu0 0.0
        %577 = vmatpush1.msra.mxu0 0.0
        %578 = vmatprep.mubr.f32.mxu0 0.0
        %579 = vmatmul.mubr.f32.gmra.mrb[0].mxu0 %v443
        %v580 = vpop.f32.mrb[0].mxu0
        %v581 = vadd.f32 0.0, %v580
        %v582 = vpop.f32.mrb[0].mxu0
        %v583 = vadd.f32 0.0, %v582
        %584 = vdwg.mxu0
        %585 = vmatprep.subr.mxu0 %v453
        %586 = vmatpush1.msra.mxu0 %v452
        %587 = vmatprep.subr.mxu0 %v457
        %588 = vmatpush1.msra.mxu0 %v456
        %589 = vmatprep.subr.mxu0 %v461
        %590 = vmatpush1.msra.mxu0 %v460
        %591 = vmatprep.subr.mxu0 %v465
        %592 = vmatpush1.msra.mxu0 %v464
        %593 = vmatprep.subr.mxu0 %v469
        %594 = vmatpush1.msra.mxu0 %v468
        %595 = vmatprep.subr.mxu0 %v473
        %596 = vmatpush1.msra.mxu0 %v472
        %597 = vmatprep.subr.mxu0 %v477
        %598 = vmatpush1.msra.mxu0 %v476
        %599 = vmatprep.subr.mxu0 %v481
        %600 = vmatpush1.msra.mxu0 %v480
        %601 = vmatprep.subr.mxu0 %v485
        %602 = vmatpush1.msra.mxu0 %v484
        %603 = vmatprep.subr.mxu0 %v489
        %604 = vmatpush1.msra.mxu0 %v488
        %605 = vmatprep.subr.mxu0 %v493
        %606 = vmatpush1.msra.mxu0 %v492
        %607 = vmatprep.subr.mxu0 %v497
        %608 = vmatpush1.msra.mxu0 %v496
        %609 = vmatprep.subr.mxu0 %v501
        %610 = vmatpush1.msra.mxu0 %v500
        %611 = vmatprep.subr.mxu0 %v505
        %612 = vmatpush1.msra.mxu0 %v504
        %613 = vmatprep.subr.mxu0 %v509
        %614 = vmatpush1.msra.mxu0 %v508
        %615 = vmatprep.subr.mxu0 %v513
        %616 = vmatpush1.msra.mxu0 %v512
        %617 = vmatprep.subr.mxu0 0.0
        %618 = vmatpush1.msra.mxu0 0.0
        %619 = vmatprep.subr.mxu0 0.0
        %620 = vmatpush1.msra.mxu0 0.0
        %621 = vmatprep.subr.mxu0 0.0
        %622 = vmatpush1.msra.mxu0 0.0
        %623 = vmatprep.subr.mxu0 0.0
        %624 = vmatpush1.msra.mxu0 0.0
        %625 = vmatprep.subr.mxu0 0.0
        %626 = vmatpush1.msra.mxu0 0.0
        %627 = vmatprep.subr.mxu0 0.0
        %628 = vmatpush1.msra.mxu0 0.0
        %629 = vmatprep.subr.mxu0 0.0
        %630 = vmatpush1.msra.mxu0 0.0
        %631 = vmatprep.subr.mxu0 0.0
        %632 = vmatpush1.msra.mxu0 0.0
        %633 = vmatprep.subr.mxu0 0.0
        %634 = vmatpush1.msra.mxu0 0.0
        %635 = vmatprep.subr.mxu0 0.0
        %636 = vmatpush1.msra.mxu0 0.0
        %637 = vmatprep.subr.mxu0 0.0
        %638 = vmatpush1.msra.mxu0 0.0
        %639 = vmatprep.subr.mxu0 0.0
        %640 = vmatpush1.msra.mxu0 0.0
        %641 = vmatprep.subr.mxu0 0.0
        %642 = vmatpush1.msra.mxu0 0.0
        %643 = vmatprep.subr.mxu0 0.0
        %644 = vmatpush1.msra.mxu0 0.0
        %645 = vmatprep.subr.mxu0 0.0
        %646 = vmatpush1.msra.mxu0 0.0
        %647 = vmatprep.subr.mxu0 0.0
        %648 = vmatpush1.msra.mxu0 0.0
        %649 = vmatprep.mubr.f32.mxu0 0.0
        %650 = vmatmul.mubr.f32.gmra.mrb[0].mxu0 %v443
        %v651 = vpop.f32.mrb[0].mxu0
        %v652 = vadd.f32 0.0, %v651
        %v653 = vpop.f32.mrb[0].mxu0
        %v654 = vadd.f32 0.0, %v653
        %655 = vdwg.mxu0
        %v656 = vadd.f32 %v446, %v581
        %v657 = vadd.f32 %v447, %v583
        %v658 = vadd.f32 %v448, %v652
        %v659 = vadd.f32 %v449, %v654
        %v660 = vxor.u32 %v656, 2147483648
        %v661 = vmul.f32 %v660, 1.442695
        %v662 = vpow.pop %v661
        %v663 = vadd.f32 %v662, 1.0
        %v664 = vrcp.pop %v663
        %v665 = vmul.f32 1.0, %v664
        %v666 = vxor.u32 %v657, 2147483648
        %v667 = vmul.f32 %v666, 1.442695
        %v668 = vpow.pop %v667
        %v669 = vadd.f32 %v668, 1.0
        %v670 = vrcp.pop %v669
        %v671 = vmul.f32 1.0, %v670
        %v672 = vtanh.pop %v658
        %v673 = vxor.u32 %v659, 2147483648
        %v674 = vmul.f32 %v673, 1.442695
        %v675 = vpow.pop %v674
        %v676 = vadd.f32 %v675, 1.0
        %v677 = vrcp.pop %v676
        %v678 = vmul.f32 1.0, %v677
        %v679 = vmul.f32 %v671, %v441
        %v680 = vmul.f32 %v665, %v672
        %v681 = vadd.f32 %v679, %v680
        %v682 = vtanh.pop %v681
        %v683 = vmul.f32 %v678, %v682
        %s684 = scalar_lea.vmem %s195, 8 [#allocation9]
        %685 = vst [vmem:[%s684] sm:$0xff] %v683
        %s686 = scalar_lea.vmem %s171, 64 [#allocation4]
        %v687 = vld [vmem:[%s686] sm:$0xff]
        %v688 = vld [vmem:[%s686 + $0x8] sm:$0xff]
        %v689 = vld [vmem:[%s686 + $0x10] sm:$0xff]
        %v690 = vld [vmem:[%s686 + $0x18] sm:$0xff]
        %v691 = vld [vmem:[#allocation7] sm:$0xff]
        %v692 = vld [vmem:[#allocation7 + $0x8] sm:$0xff]
        %v693 = vld [vmem:[#allocation7 + $0x10] sm:$0xff]
        %v694 = vld [vmem:[#allocation7 + $0x18] sm:$0xff]
        %v695 = vld [vmem:[#allocation7 + $0x20] sm:$0xff]
        %v696 = vld [vmem:[#allocation7 + $0x28] sm:$0xff]
        %v697 = vld [vmem:[#allocation7 + $0x30] sm:$0xff]
        %v698 = vld [vmem:[#allocation7 + $0x38] sm:$0xff]
        %v699 = vld [vmem:[#allocation7 + $0x40] sm:$0xff]
        %v700 = vld [vmem:[#allocation7 + $0x48] sm:$0xff]
        %v701 = vld [vmem:[#allocation7 + $0x50] sm:$0xff]
        %v702 = vld [vmem:[#allocation7 + $0x58] sm:$0xff]
        %v703 = vld [vmem:[#allocation7 + $0x60] sm:$0xff]
        %v704 = vld [vmem:[#allocation7 + $0x68] sm:$0xff]
        %v705 = vld [vmem:[#allocation7 + $0x70] sm:$0xff]
        %v706 = vld [vmem:[#allocation7 + $0x78] sm:$0xff]
        %v707 = vld [vmem:[#allocation7 + $0x80] sm:$0xff]
        %v708 = vld [vmem:[#allocation7 + $0x88] sm:$0xff]
        %v709 = vld [vmem:[#allocation7 + $0x90] sm:$0xff]
        %v710 = vld [vmem:[#allocation7 + $0x98] sm:$0xff]
        %v711 = vld [vmem:[#allocation7 + $0xa0] sm:$0xff]
        %v712 = vld [vmem:[#allocation7 + $0xa8] sm:$0xff]
        %v713 = vld [vmem:[#allocation7 + $0xb0] sm:$0xff]
        %v714 = vld [vmem:[#allocation7 + $0xb8] sm:$0xff]
        %v715 = vld [vmem:[#allocation7 + $0xc0] sm:$0xff]
        %v716 = vld [vmem:[#allocation7 + $0xc8] sm:$0xff]
        %v717 = vld [vmem:[#allocation7 + $0xd0] sm:$0xff]
        %v718 = vld [vmem:[#allocation7 + $0xd8] sm:$0xff]
        %v719 = vld [vmem:[#allocation7 + $0xe0] sm:$0xff]
        %v720 = vld [vmem:[#allocation7 + $0xe8] sm:$0xff]
        %v721 = vld [vmem:[#allocation7 + $0xf0] sm:$0xff]
        %v722 = vld [vmem:[#allocation7 + $0xf8] sm:$0xff]
        %v723 = vld [vmem:[#allocation7 + $0x100] sm:$0xff]
        %v724 = vld [vmem:[#allocation7 + $0x108] sm:$0xff]
        %v725 = vld [vmem:[#allocation7 + $0x110] sm:$0xff]
        %v726 = vld [vmem:[#allocation7 + $0x118] sm:$0xff]
        %v727 = vld [vmem:[#allocation7 + $0x120] sm:$0xff]
        %v728 = vld [vmem:[#allocation7 + $0x128] sm:$0xff]
        %v729 = vld [vmem:[#allocation7 + $0x130] sm:$0xff]
        %v730 = vld [vmem:[#allocation7 + $0x138] sm:$0xff]
        %v731 = vld [vmem:[#allocation7 + $0x140] sm:$0xff]
        %v732 = vld [vmem:[#allocation7 + $0x148] sm:$0xff]
        %v733 = vld [vmem:[#allocation7 + $0x150] sm:$0xff]
        %v734 = vld [vmem:[#allocation7 + $0x158] sm:$0xff]
        %v735 = vld [vmem:[#allocation7 + $0x160] sm:$0xff]
        %v736 = vld [vmem:[#allocation7 + $0x168] sm:$0xff]
        %v737 = vld [vmem:[#allocation7 + $0x170] sm:$0xff]
        %v738 = vld [vmem:[#allocation7 + $0x178] sm:$0xff]
        %v739 = vld [vmem:[#allocation7 + $0x180] sm:$0xff]
        %v740 = vld [vmem:[#allocation7 + $0x188] sm:$0xff]
        %v741 = vld [vmem:[#allocation7 + $0x190] sm:$0xff]
        %v742 = vld [vmem:[#allocation7 + $0x198] sm:$0xff]
        %v743 = vld [vmem:[#allocation7 + $0x1a0] sm:$0xff]
        %v744 = vld [vmem:[#allocation7 + $0x1a8] sm:$0xff]
        %v745 = vld [vmem:[#allocation7 + $0x1b0] sm:$0xff]
        %v746 = vld [vmem:[#allocation7 + $0x1b8] sm:$0xff]
        %v747 = vld [vmem:[#allocation7 + $0x1c0] sm:$0xff]
        %v748 = vld [vmem:[#allocation7 + $0x1c8] sm:$0xff]
        %v749 = vld [vmem:[#allocation7 + $0x1d0] sm:$0xff]
        %v750 = vld [vmem:[#allocation7 + $0x1d8] sm:$0xff]
        %v751 = vld [vmem:[#allocation7 + $0x1e0] sm:$0xff]
        %v752 = vld [vmem:[#allocation7 + $0x1e8] sm:$0xff]
        %v753 = vld [vmem:[#allocation7 + $0x1f0] sm:$0xff]
        %v754 = vld [vmem:[#allocation7 + $0x1f8] sm:$0xff]
        %755 = vmatprep.subr.mxu0 %v692
        %756 = vmatpush1.msra.mxu0 %v691
        %757 = vmatprep.subr.mxu0 %v696
        %758 = vmatpush1.msra.mxu0 %v695
        %759 = vmatprep.subr.mxu0 %v700
        %760 = vmatpush1.msra.mxu0 %v699
        %761 = vmatprep.subr.mxu0 %v704
        %762 = vmatpush1.msra.mxu0 %v703
        %763 = vmatprep.subr.mxu0 %v708
        %764 = vmatpush1.msra.mxu0 %v707
        %765 = vmatprep.subr.mxu0 %v712
        %766 = vmatpush1.msra.mxu0 %v711
        %767 = vmatprep.subr.mxu0 %v716
        %768 = vmatpush1.msra.mxu0 %v715
        %769 = vmatprep.subr.mxu0 %v720
        %770 = vmatpush1.msra.mxu0 %v719
        %771 = vmatprep.subr.mxu0 %v724
        %772 = vmatpush1.msra.mxu0 %v723
        %773 = vmatprep.subr.mxu0 %v728
        %774 = vmatpush1.msra.mxu0 %v727
        %775 = vmatprep.subr.mxu0 %v732
        %776 = vmatpush1.msra.mxu0 %v731
        %777 = vmatprep.subr.mxu0 %v736
        %778 = vmatpush1.msra.mxu0 %v735
        %779 = vmatprep.subr.mxu0 %v740
        %780 = vmatpush1.msra.mxu0 %v739
        %781 = vmatprep.subr.mxu0 %v744
        %782 = vmatpush1.msra.mxu0 %v743
        %783 = vmatprep.subr.mxu0 %v748
        %784 = vmatpush1.msra.mxu0 %v747
        %785 = vmatprep.subr.mxu0 %v752
        %786 = vmatpush1.msra.mxu0 %v751
        %787 = vmatprep.subr.mxu0 0.0
        %788 = vmatpush1.msra.mxu0 0.0
        %789 = vmatprep.subr.mxu0 0.0
        %790 = vmatpush1.msra.mxu0 0.0
        %791 = vmatprep.subr.mxu0 0.0
        %792 = vmatpush1.msra.mxu0 0.0
        %793 = vmatprep.subr.mxu0 0.0
        %794 = vmatpush1.msra.mxu0 0.0
        %795 = vmatprep.subr.mxu0 0.0
        %796 = vmatpush1.msra.mxu0 0.0
        %797 = vmatprep.subr.mxu0 0.0
        %798 = vmatpush1.msra.mxu0 0.0
        %799 = vmatprep.subr.mxu0 0.0
        %800 = vmatpush1.msra.mxu0 0.0
        %801 = vmatprep.subr.mxu0 0.0
        %802 = vmatpush1.msra.mxu0 0.0
        %803 = vmatprep.subr.mxu0 0.0
        %804 = vmatpush1.msra.mxu0 0.0
        %805 = vmatprep.subr.mxu0 0.0
        %806 = vmatpush1.msra.mxu0 0.0
        %807 = vmatprep.subr.mxu0 0.0
        %808 = vmatpush1.msra.mxu0 0.0
        %809 = vmatprep.subr.mxu0 0.0
        %810 = vmatpush1.msra.mxu0 0.0
        %811 = vmatprep.subr.mxu0 0.0
        %812 = vmatpush1.msra.mxu0 0.0
        %813 = vmatprep.subr.mxu0 0.0
        %814 = vmatpush1.msra.mxu0 0.0
        %815 = vmatprep.subr.mxu0 0.0
        %816 = vmatpush1.msra.mxu0 0.0
        %817 = vmatprep.subr.mxu0 0.0
        %818 = vmatpush1.msra.mxu0 0.0
        %819 = vmatprep.mubr.f32.mxu0 0.0
        %820 = vmatmul.mubr.f32.gmra.mrb[0].mxu0 %v683
        %v821 = vpop.f32.mrb[0].mxu0
        %v822 = vadd.f32 0.0, %v821
        %v823 = vpop.f32.mrb[0].mxu0
        %v824 = vadd.f32 0.0, %v823
        %825 = vdwg.mxu0
        %826 = vmatprep.subr.mxu0 %v694
        %827 = vmatpush1.msra.mxu0 %v693
        %828 = vmatprep.subr.mxu0 %v698
        %829 = vmatpush1.msra.mxu0 %v697
        %830 = vmatprep.subr.mxu0 %v702
        %831 = vmatpush1.msra.mxu0 %v701
        %832 = vmatprep.subr.mxu0 %v706
        %833 = vmatpush1.msra.mxu0 %v705
        %834 = vmatprep.subr.mxu0 %v710
        %835 = vmatpush1.msra.mxu0 %v709
        %836 = vmatprep.subr.mxu0 %v714
        %837 = vmatpush1.msra.mxu0 %v713
        %838 = vmatprep.subr.mxu0 %v718
        %839 = vmatpush1.msra.mxu0 %v717
        %840 = vmatprep.subr.mxu0 %v722
        %841 = vmatpush1.msra.mxu0 %v721
        %842 = vmatprep.subr.mxu0 %v726
        %843 = vmatpush1.msra.mxu0 %v725
        %844 = vmatprep.subr.mxu0 %v730
        %845 = vmatpush1.msra.mxu0 %v729
        %846 = vmatprep.subr.mxu0 %v734
        %847 = vmatpush1.msra.mxu0 %v733
        %848 = vmatprep.subr.mxu0 %v738
        %849 = vmatpush1.msra.mxu0 %v737
        %850 = vmatprep.subr.mxu0 %v742
        %851 = vmatpush1.msra.mxu0 %v741
        %852 = vmatprep.subr.mxu0 %v746
        %853 = vmatpush1.msra.mxu0 %v745
        %854 = vmatprep.subr.mxu0 %v750
        %855 = vmatpush1.msra.mxu0 %v749
        %856 = vmatprep.subr.mxu0 %v754
        %857 = vmatpush1.msra.mxu0 %v753
        %858 = vmatprep.subr.mxu0 0.0
        %859 = vmatpush1.msra.mxu0 0.0
        %860 = vmatprep.subr.mxu0 0.0
        %861 = vmatpush1.msra.mxu0 0.0
        %862 = vmatprep.subr.mxu0 0.0
        %863 = vmatpush1.msra.mxu0 0.0
        %864 = vmatprep.subr.mxu0 0.0
        %865 = vmatpush1.msra.mxu0 0.0
        %866 = vmatprep.subr.mxu0 0.0
        %867 = vmatpush1.msra.mxu0 0.0
        %868 = vmatprep.subr.mxu0 0.0
        %869 = vmatpush1.msra.mxu0 0.0
        %870 = vmatprep.subr.mxu0 0.0
        %871 = vmatpush1.msra.mxu0 0.0
        %872 = vmatprep.subr.mxu0 0.0
        %873 = vmatpush1.msra.mxu0 0.0
        %874 = vmatprep.subr.mxu0 0.0
        %875 = vmatpush1.msra.mxu0 0.0
        %876 = vmatprep.subr.mxu0 0.0
        %877 = vmatpush1.msra.mxu0 0.0
        %878 = vmatprep.subr.mxu0 0.0
        %879 = vmatpush1.msra.mxu0 0.0
        %880 = vmatprep.subr.mxu0 0.0
        %881 = vmatpush1.msra.mxu0 0.0
        %882 = vmatprep.subr.mxu0 0.0
        %883 = vmatpush1.msra.mxu0 0.0
        %884 = vmatprep.subr.mxu0 0.0
        %885 = vmatpush1.msra.mxu0 0.0
        %886 = vmatprep.subr.mxu0 0.0
        %887 = vmatpush1.msra.mxu0 0.0
        %888 = vmatprep.subr.mxu0 0.0
        %889 = vmatpush1.msra.mxu0 0.0
        %890 = vmatprep.mubr.f32.mxu0 0.0
        %891 = vmatmul.mubr.f32.gmra.mrb[0].mxu0 %v683
        %v892 = vpop.f32.mrb[0].mxu0
        %v893 = vadd.f32 0.0, %v892
        %v894 = vpop.f32.mrb[0].mxu0
        %v895 = vadd.f32 0.0, %v894
        %896 = vdwg.mxu0
        %v897 = vadd.f32 %v687, %v822
        %v898 = vadd.f32 %v688, %v824
        %v899 = vadd.f32 %v689, %v893
        %v900 = vadd.f32 %v690, %v895
        %v901 = vxor.u32 %v897, 2147483648
        %v902 = vmul.f32 %v901, 1.442695
        %v903 = vpow.pop %v902
        %v904 = vadd.f32 %v903, 1.0
        %v905 = vrcp.pop %v904
        %v906 = vmul.f32 1.0, %v905
        %v907 = vxor.u32 %v898, 2147483648
        %v908 = vmul.f32 %v907, 1.442695
        %v909 = vpow.pop %v908
        %v910 = vadd.f32 %v909, 1.0
        %v911 = vrcp.pop %v910
        %v912 = vmul.f32 1.0, %v911
        %v913 = vtanh.pop %v899
        %v914 = vxor.u32 %v900, 2147483648
        %v915 = vmul.f32 %v914, 1.442695
        %v916 = vpow.pop %v915
        %v917 = vadd.f32 %v916, 1.0
        %v918 = vrcp.pop %v917
        %v919 = vmul.f32 1.0, %v918
        %v920 = vmul.f32 %v912, %v681
        %v921 = vmul.f32 %v906, %v913
        %v922 = vadd.f32 %v920, %v921
        %v923 = vtanh.pop %v922
        %v924 = vmul.f32 %v919, %v923
        %s925 = scalar_lea.vmem %s195, 16 [#allocation9]
        %926 = vst [vmem:[%s925] sm:$0xff] %v924
        %s927 = scalar_lea.vmem %s171, 96 [#allocation4]
        %v928 = vld [vmem:[%s927] sm:$0xff]
        %v929 = vld [vmem:[%s927 + $0x8] sm:$0xff]
        %v930 = vld [vmem:[%s927 + $0x10] sm:$0xff]
        %v931 = vld [vmem:[%s927 + $0x18] sm:$0xff]
        %v932 = vld [vmem:[#allocation7] sm:$0xff]
        %v933 = vld [vmem:[#allocation7 + $0x8] sm:$0xff]
        %v934 = vld [vmem:[#allocation7 + $0x10] sm:$0xff]
        %v935 = vld [vmem:[#allocation7 + $0x18] sm:$0xff]
        %v936 = vld [vmem:[#allocation7 + $0x20] sm:$0xff]
        %v937 = vld [vmem:[#allocation7 + $0x28] sm:$0xff]
        %v938 = vld [vmem:[#allocation7 + $0x30] sm:$0xff]
        %v939 = vld [vmem:[#allocation7 + $0x38] sm:$0xff]
        %v940 = vld [vmem:[#allocation7 + $0x40] sm:$0xff]
        %v941 = vld [vmem:[#allocation7 + $0x48] sm:$0xff]
        %v942 = vld [vmem:[#allocation7 + $0x50] sm:$0xff]
        %v943 = vld [vmem:[#allocation7 + $0x58] sm:$0xff]
        %v944 = vld [vmem:[#allocation7 + $0x60] sm:$0xff]
        %v945 = vld [vmem:[#allocation7 + $0x68] sm:$0xff]
        %v946 = vld [vmem:[#allocation7 + $0x70] sm:$0xff]
        %v947 = vld [vmem:[#allocation7 + $0x78] sm:$0xff]
        %v948 = vld [vmem:[#allocation7 + $0x80] sm:$0xff]
        %v949 = vld [vmem:[#allocation7 + $0x88] sm:$0xff]
        %v950 = vld [vmem:[#allocation7 + $0x90] sm:$0xff]
        %v951 = vld [vmem:[#allocation7 + $0x98] sm:$0xff]
        %v952 = vld [vmem:[#allocation7 + $0xa0] sm:$0xff]
        %v953 = vld [vmem:[#allocation7 + $0xa8] sm:$0xff]
        %v954 = vld [vmem:[#allocation7 + $0xb0] sm:$0xff]
        %v955 = vld [vmem:[#allocation7 + $0xb8] sm:$0xff]
        %v956 = vld [vmem:[#allocation7 + $0xc0] sm:$0xff]
        %v957 = vld [vmem:[#allocation7 + $0xc8] sm:$0xff]
        %v958 = vld [vmem:[#allocation7 + $0xd0] sm:$0xff]
        %v959 = vld [vmem:[#allocation7 + $0xd8] sm:$0xff]
        %v960 = vld [vmem:[#allocation7 + $0xe0] sm:$0xff]
        %v961 = vld [vmem:[#allocation7 + $0xe8] sm:$0xff]
        %v962 = vld [vmem:[#allocation7 + $0xf0] sm:$0xff]
        %v963 = vld [vmem:[#allocation7 + $0xf8] sm:$0xff]
        %v964 = vld [vmem:[#allocation7 + $0x100] sm:$0xff]
        %v965 = vld [vmem:[#allocation7 + $0x108] sm:$0xff]
        %v966 = vld [vmem:[#allocation7 + $0x110] sm:$0xff]
        %v967 = vld [vmem:[#allocation7 + $0x118] sm:$0xff]
        %v968 = vld [vmem:[#allocation7 + $0x120] sm:$0xff]
        %v969 = vld [vmem:[#allocation7 + $0x128] sm:$0xff]
        %v970 = vld [vmem:[#allocation7 + $0x130] sm:$0xff]
        %v971 = vld [vmem:[#allocation7 + $0x138] sm:$0xff]
        %v972 = vld [vmem:[#allocation7 + $0x140] sm:$0xff]
        %v973 = vld [vmem:[#allocation7 + $0x148] sm:$0xff]
        %v974 = vld [vmem:[#allocation7 + $0x150] sm:$0xff]
        %v975 = vld [vmem:[#allocation7 + $0x158] sm:$0xff]
        %v976 = vld [vmem:[#allocation7 + $0x160] sm:$0xff]
        %v977 = vld [vmem:[#allocation7 + $0x168] sm:$0xff]
        %v978 = vld [vmem:[#allocation7 + $0x170] sm:$0xff]
        %v979 = vld [vmem:[#allocation7 + $0x178] sm:$0xff]
        %v980 = vld [vmem:[#allocation7 + $0x180] sm:$0xff]
        %v981 = vld [vmem:[#allocation7 + $0x188] sm:$0xff]
        %v982 = vld [vmem:[#allocation7 + $0x190] sm:$0xff]
        %v983 = vld [vmem:[#allocation7 + $0x198] sm:$0xff]
        %v984 = vld [vmem:[#allocation7 + $0x1a0] sm:$0xff]
        %v985 = vld [vmem:[#allocation7 + $0x1a8] sm:$0xff]
        %v986 = vld [vmem:[#allocation7 + $0x1b0] sm:$0xff]
        %v987 = vld [vmem:[#allocation7 + $0x1b8] sm:$0xff]
        %v988 = vld [vmem:[#allocation7 + $0x1c0] sm:$0xff]
        %v989 = vld [vmem:[#allocation7 + $0x1c8] sm:$0xff]
        %v990 = vld [vmem:[#allocation7 + $0x1d0] sm:$0xff]
        %v991 = vld [vmem:[#allocation7 + $0x1d8] sm:$0xff]
        %v992 = vld [vmem:[#allocation7 + $0x1e0] sm:$0xff]
        %v993 = vld [vmem:[#allocation7 + $0x1e8] sm:$0xff]
        %v994 = vld [vmem:[#allocation7 + $0x1f0] sm:$0xff]
        %v995 = vld [vmem:[#allocation7 + $0x1f8] sm:$0xff]
        %996 = vmatprep.subr.mxu0 %v933
        %997 = vmatpush1.msra.mxu0 %v932
        %998 = vmatprep.subr.mxu0 %v937
        %999 = vmatpush1.msra.mxu0 %v936
        %1000 = vmatprep.subr.mxu0 %v941
        %1001 = vmatpush1.msra.mxu0 %v940
        %1002 = vmatprep.subr.mxu0 %v945
        %1003 = vmatpush1.msra.mxu0 %v944
        %1004 = vmatprep.subr.mxu0 %v949
        %1005 = vmatpush1.msra.mxu0 %v948
        %1006 = vmatprep.subr.mxu0 %v953
        %1007 = vmatpush1.msra.mxu0 %v952
        %1008 = vmatprep.subr.mxu0 %v957
        %1009 = vmatpush1.msra.mxu0 %v956
        %1010 = vmatprep.subr.mxu0 %v961
        %1011 = vmatpush1.msra.mxu0 %v960
        %1012 = vmatprep.subr.mxu0 %v965
        %1013 = vmatpush1.msra.mxu0 %v964
        %1014 = vmatprep.subr.mxu0 %v969
        %1015 = vmatpush1.msra.mxu0 %v968
        %1016 = vmatprep.subr.mxu0 %v973
        %1017 = vmatpush1.msra.mxu0 %v972
        %1018 = vmatprep.subr.mxu0 %v977
        %1019 = vmatpush1.msra.mxu0 %v976
        %1020 = vmatprep.subr.mxu0 %v981
        %1021 = vmatpush1.msra.mxu0 %v980
        %1022 = vmatprep.subr.mxu0 %v985
        %1023 = vmatpush1.msra.mxu0 %v984
        %1024 = vmatprep.subr.mxu0 %v989
        %1025 = vmatpush1.msra.mxu0 %v988
        %1026 = vmatprep.subr.mxu0 %v993
        %1027 = vmatpush1.msra.mxu0 %v992
        %1028 = vmatprep.subr.mxu0 0.0
        %1029 = vmatpush1.msra.mxu0 0.0
        %1030 = vmatprep.subr.mxu0 0.0
        %1031 = vmatpush1.msra.mxu0 0.0
        %1032 = vmatprep.subr.mxu0 0.0
        %1033 = vmatpush1.msra.mxu0 0.0
        %1034 = vmatprep.subr.mxu0 0.0
        %1035 = vmatpush1.msra.mxu0 0.0
        %1036 = vmatprep.subr.mxu0 0.0
        %1037 = vmatpush1.msra.mxu0 0.0
        %1038 = vmatprep.subr.mxu0 0.0
        %1039 = vmatpush1.msra.mxu0 0.0
        %1040 = vmatprep.subr.mxu0 0.0
        %1041 = vmatpush1.msra.mxu0 0.0
        %1042 = vmatprep.subr.mxu0 0.0
        %1043 = vmatpush1.msra.mxu0 0.0
        %1044 = vmatprep.subr.mxu0 0.0
        %1045 = vmatpush1.msra.mxu0 0.0
        %1046 = vmatprep.subr.mxu0 0.0
        %1047 = vmatpush1.msra.mxu0 0.0
        %1048 = vmatprep.subr.mxu0 0.0
        %1049 = vmatpush1.msra.mxu0 0.0
        %1050 = vmatprep.subr.mxu0 0.0
        %1051 = vmatpush1.msra.mxu0 0.0
        %1052 = vmatprep.subr.mxu0 0.0
        %1053 = vmatpush1.msra.mxu0 0.0
        %1054 = vmatprep.subr.mxu0 0.0
        %1055 = vmatpush1.msra.mxu0 0.0
        %1056 = vmatprep.subr.mxu0 0.0
        %1057 = vmatpush1.msra.mxu0 0.0
        %1058 = vmatprep.subr.mxu0 0.0
        %1059 = vmatpush1.msra.mxu0 0.0
        %1060 = vmatprep.mubr.f32.mxu0 0.0
        %1061 = vmatmul.mubr.f32.gmra.mrb[0].mxu0 %v924
        %v1062 = vpop.f32.mrb[0].mxu0
        %v1063 = vadd.f32 0.0, %v1062
        %v1064 = vpop.f32.mrb[0].mxu0
        %v1065 = vadd.f32 0.0, %v1064
        %1066 = vdwg.mxu0
        %1067 = vmatprep.subr.mxu0 %v935
        %1068 = vmatpush1.msra.mxu0 %v934
        %1069 = vmatprep.subr.mxu0 %v939
        %1070 = vmatpush1.msra.mxu0 %v938
        %1071 = vmatprep.subr.mxu0 %v943
        %1072 = vmatpush1.msra.mxu0 %v942
        %1073 = vmatprep.subr.mxu0 %v947
        %1074 = vmatpush1.msra.mxu0 %v946
        %1075 = vmatprep.subr.mxu0 %v951
        %1076 = vmatpush1.msra.mxu0 %v950
        %1077 = vmatprep.subr.mxu0 %v955
        %1078 = vmatpush1.msra.mxu0 %v954
        %1079 = vmatprep.subr.mxu0 %v959
        %1080 = vmatpush1.msra.mxu0 %v958
        %1081 = vmatprep.subr.mxu0 %v963
        %1082 = vmatpush1.msra.mxu0 %v962
        %1083 = vmatprep.subr.mxu0 %v967
        %1084 = vmatpush1.msra.mxu0 %v966
        %1085 = vmatprep.subr.mxu0 %v971
        %1086 = vmatpush1.msra.mxu0 %v970
        %1087 = vmatprep.subr.mxu0 %v975
        %1088 = vmatpush1.msra.mxu0 %v974
        %1089 = vmatprep.subr.mxu0 %v979
        %1090 = vmatpush1.msra.mxu0 %v978
        %1091 = vmatprep.subr.mxu0 %v983
        %1092 = vmatpush1.msra.mxu0 %v982
        %1093 = vmatprep.subr.mxu0 %v987
        %1094 = vmatpush1.msra.mxu0 %v986
        %1095 = vmatprep.subr.mxu0 %v991
        %1096 = vmatpush1.msra.mxu0 %v990
        %1097 = vmatprep.subr.mxu0 %v995
        %1098 = vmatpush1.msra.mxu0 %v994
        %1099 = vmatprep.subr.mxu0 0.0
        %1100 = vmatpush1.msra.mxu0 0.0
        %1101 = vmatprep.subr.mxu0 0.0
        %1102 = vmatpush1.msra.mxu0 0.0
        %1103 = vmatprep.subr.mxu0 0.0
        %1104 = vmatpush1.msra.mxu0 0.0
        %1105 = vmatprep.subr.mxu0 0.0
        %1106 = vmatpush1.msra.mxu0 0.0
        %1107 = vmatprep.subr.mxu0 0.0
        %1108 = vmatpush1.msra.mxu0 0.0
        %1109 = vmatprep.subr.mxu0 0.0
        %1110 = vmatpush1.msra.mxu0 0.0
        %1111 = vmatprep.subr.mxu0 0.0
        %1112 = vmatpush1.msra.mxu0 0.0
        %1113 = vmatprep.subr.mxu0 0.0
        %1114 = vmatpush1.msra.mxu0 0.0
        %1115 = vmatprep.subr.mxu0 0.0
        %1116 = vmatpush1.msra.mxu0 0.0
        %1117 = vmatprep.subr.mxu0 0.0
        %1118 = vmatpush1.msra.mxu0 0.0
        %1119 = vmatprep.subr.mxu0 0.0
        %1120 = vmatpush1.msra.mxu0 0.0
        %1121 = vmatprep.subr.mxu0 0.0
        %1122 = vmatpush1.msra.mxu0 0.0
        %1123 = vmatprep.subr.mxu0 0.0
        %1124 = vmatpush1.msra.mxu0 0.0
        %1125 = vmatprep.subr.mxu0 0.0
        %1126 = vmatpush1.msra.mxu0 0.0
        %1127 = vmatprep.subr.mxu0 0.0
        %1128 = vmatpush1.msra.mxu0 0.0
        %1129 = vmatprep.subr.mxu0 0.0
        %1130 = vmatpush1.msra.mxu0 0.0
        %1131 = vmatprep.mubr.f32.mxu0 0.0
        %1132 = vmatmul.mubr.f32.gmra.mrb[0].mxu0 %v924
        %v1133 = vpop.f32.mrb[0].mxu0
        %v1134 = vadd.f32 0.0, %v1133
        %v1135 = vpop.f32.mrb[0].mxu0
        %v1136 = vadd.f32 0.0, %v1135
        %1137 = vdwg.mxu0
        %v1138 = vadd.f32 %v928, %v1063
        %v1139 = vadd.f32 %v929, %v1065
        %v1140 = vadd.f32 %v930, %v1134
        %v1141 = vadd.f32 %v931, %v1136
        %v1142 = vxor.u32 %v1138, 2147483648
        %v1143 = vmul.f32 %v1142, 1.442695
        %v1144 = vpow.pop %v1143
        %v1145 = vadd.f32 %v1144, 1.0
        %v1146 = vrcp.pop %v1145
        %v1147 = vmul.f32 1.0, %v1146
        %v1148 = vxor.u32 %v1139, 2147483648
        %v1149 = vmul.f32 %v1148, 1.442695
        %v1150 = vpow.pop %v1149
        %v1151 = vadd.f32 %v1150, 1.0
        %v1152 = vrcp.pop %v1151
        %v1153 = vmul.f32 1.0, %v1152
        %v1154 = vtanh.pop %v1140
        %v1155 = vxor.u32 %v1141, 2147483648
        %v1156 = vmul.f32 %v1155, 1.442695
        %v1157 = vpow.pop %v1156
        %v1158 = vadd.f32 %v1157, 1.0
        %v1159 = vrcp.pop %v1158
        %v1160 = vmul.f32 1.0, %v1159
        %v1161 = vmul.f32 %v1153, %v922
        %v1162 = vmul.f32 %v1147, %v1154
        %v1163 = vadd.f32 %v1161, %v1162
        %v1164 = vtanh.pop %v1163
        %v1165 = vmul.f32 %v1160, %v1164
        %s1166 = scalar_lea.vmem %s195, 24 [#allocation9]
        %1167 = vst [vmem:[%s1166] sm:$0xff] %v1165
        %1168 = vst [vmem:[#allocation2] sm:$0xff] %v1165
        %1169 = vst [vmem:[#allocation3] sm:$0xff] %v1163
        %s1170 = sand.u32 %s91, 1
        %s1171 = scalar_lea.sflag [#allocation6], %s1170
        %s1172 = sand.u32 %s91, 1
        %s1173 = smul.addr %s1172, 32
        %s1174 = scalar_lea.vmem [#allocation9], %s1173
        // Predicated region
        $region41: #{tpu_custom_call.1} parent=27 // pred_check
          %p1175 = pneg %p101
        $region42: #{tpu_custom_call.1} parent=27 // pred_check_branch
          %1177 = sbr.rel (%p1175) target = $region44
        $region43: #{tpu_custom_call.1} parent=27 // pred_region
          %s1178 = smul.u32 4, %s25
          %s1180 = ssub.s32 512, 512
          %1181 = vsyncadd %s1171, %s1180
          %s1182 = sadd.s32 %s24, %s1178
          %s1183 = smul.addr %s1182, 128
          %s1184 = scalar_lea.hbm %s2, %s1183
          %s1185 = sshll.u32 %s1174, 4
          %s1186 = int_to_ptr.vmem [resolvable:$true] %s1185
          %1191 = dma.vmem_to_hbm [thread:$0]  %s1186, 512, %s1184, %s1171, 128, 128, 8
        $region44: #{tpu_custom_call.1} parent=27 // pred_fallthru
          _
      $region28: #{tpu_custom_call.1} parent=5 // pred_fallthru
        _
      %p1192 = scmp.le.s32.totalorder 2, %s15
      // Predicated region
      $region45: #{tpu_custom_call.1} parent=5 // pred_check
        %p1193 = pneg %p1192
      $region46: #{tpu_custom_call.1} parent=5 // pred_check_branch
        %1195 = sbr.rel (%p1193) target = $region48
      $region47: #{tpu_custom_call.1} parent=5 // pred_region
        %s1196 = ssub.s32 %s15, 2
        // Predicated region
        $region49: #{tpu_custom_call.1} parent=47 // pred_check
          %p1197 = pneg %p107
        $region50: #{tpu_custom_call.1} parent=47 // pred_check_branch
          %1199 = sbr.rel (%p1197) target = $region52
        $region51: #{tpu_custom_call.1} parent=47 // pred_region
          %s1200 = sand.u32 %s92, 1
          %s1201 = scalar_lea.sflag [#allocation6], %s1200
          %s1202 = sand.u32 %s92, 1
          %s1203 = smul.addr %s1202, 32
          %s1204 = scalar_lea.vmem [#allocation9], %s1203
          %1205 = dma.done %s1201, 512
        $region52: #{tpu_custom_call.1} parent=47 // pred_fallthru
          _
      $region48: #{tpu_custom_call.1} parent=5 // pred_fallthru
        _
    $region6: #{tpu_custom_call.1} parent=1 // loop_footer
      %s19 = sadd.s32 1, %s15
    $region7: #{tpu_custom_call.1} parent=1 // loop_footer_branch
      %14 = sbr.rel target = $region3
    $region8: #{tpu_custom_call.1} parent=1 // loop_exit
      _
    %1206 = vsyncpa [#allocation5], 1
    %s1207 = scalar_lea.sflag [#allocation5], 1
    %1208 = vsyncpa %s1207, 1
    %1209 = vsyncpa [#allocation8], 1
    %1210 = vsyncpa [#allocation6], 1
    %s1211 = scalar_lea.sflag [#allocation6], 1
    %1212 = vsyncpa %s1211, 1

</llo_original>
